<compile_context>
chip_gen: v6e
topology: v6e:2x2x1
jax: 0.10.0
libtpu: 0.0.40
codegen_flags: <defaults>
</compile_context>

<pallas_src>
import jax
import jax.numpy as jnp
from jax import lax
from jax.experimental import pallas as pl
from jax.experimental.pallas import tpu as pltpu


# -----------------------------------------------------------------------------
# Pallas kernel: per-sample  W @ patches  ->  GroupNorm(1)  ->  SiLU
# -----------------------------------------------------------------------------
def _conv_gn_silu_kernel(p_ref, w_ref, g_ref, b_ref, o_ref):
    # p_ref : (S, CKp, P)  bf16   im2col patches, lane-dense (P on lanes)
    # w_ref : (MC, CKp)    bf16   conv weight (zero-padded contraction dim)
    # g_ref : (MC, 1)      f32    GroupNorm gamma
    # b_ref : (MC, 1)      f32    GroupNorm beta
    # o_ref : (S, MC, P)   f32    lane-dense output
    S = p_ref.shape[0]
    MC = o_ref.shape[1]
    P = o_ref.shape[2]

    # Hoisted loop invariants (loaded once per grid step).
    w = w_ref[...]                  # (MC, CKp) bf16
    gamma = g_ref[...]              # (MC, 1)  f32
    beta = b_ref[...]               # (MC, 1)  f32
    inv_n = 1.0 / float(MC * P)     # GroupNorm(1): reduce over all (MC, P) elems

    def body(s, carry):
        # Conv as matmul on the MXU, f32 accumulation; result is lane-dense (MC, P).
        x = jnp.dot(w, p_ref[s], preferred_element_type=jnp.float32)

        # Single-pass GroupNorm stats over the true (MC, P) elements only
        # (CK padding is on the contraction dim -> contributes zeros, safe).
        total = jnp.sum(x)
        total_sq = jnp.sum(x * x)
        mean = total * inv_n
        var = total_sq * inv_n - mean * mean          # biased variance (PyTorch)
        inv = lax.rsqrt(var + 1e-5)

        scale = gamma * inv                           # (MC, 1) broadcast over lanes
        shift = beta - mean * scale                   # (MC, 1)
        y = x * scale + shift

        # SiLU (f32 on VPU/EUP)
        o_ref[s] = y * jax.nn.sigmoid(y)
        return carry

    # fori_loop bounds vreg live ranges at large S; unroll small trip counts
    # so the LLO scheduler still sees them.
    lax.fori_loop(0, S, body, None, unroll=(S <= 8))


# -----------------------------------------------------------------------------
# JAX glue: bf16 im2col (lane-dense), block-size heuristic, pallas_call
# -----------------------------------------------------------------------------
def _im2col_bf16(x_bf, k=3, s=2, p=1, ck_pad=None):
    # x_bf: (NS, C, H, W) bf16 -> (NS, CKp, OH*OW) bf16
    # dim-1 order is (c, kh, kw); dim-2 is the (OH, OW) spatial axis (lane-dense).
    NS, C, H, W = x_bf.shape
    OH = (H + 2 * p - k) // s + 1
    OW = (W + 2 * p - k) // s + 1
    xp = jnp.pad(x_bf, ((0, 0), (0, 0), (p, p), (p, p)))
    taps = []
    for i in range(k):
        for j in range(k):
            taps.append(xp[:, :, i:i + s * OH:s, j:j + s * OW:s])  # (NS, C, OH, OW)
    pt = jnp.stack(taps, axis=2).reshape(NS, C * k * k, OH * OW)   # (NS, CK, P) bf16
    if ck_pad is not None and ck_pad > C * k * k:
        pt = jnp.pad(pt, ((0, 0), (0, ck_pad - C * k * k), (0, 0)))
    return pt, OH, OW


def _pick_samples_per_block(ns, per_sample_block_bytes,
                            vmem_budget=8 << 20, s_max=128):
    """Largest divisor of ns that fits the VMEM budget, caps at s_max, and keeps
    grid length >= 2 whenever possible (v7x has 2 TensorCores per chip)."""
    best = 1
    for d in range(1, ns + 1):
        if ns % d:
            continue
        if d > s_max or d * per_sample_block_bytes > vmem_budget:
            break
        if ns > 1 and ns // d < 2:
            break
        best = d
    return best


def encoder_forward(x, conv_w, gn_gamma, gn_beta, n_layers):
    """x: (B, T, C, H, W) float32.  Returns (B, T, MC, H//2, W//2) float32."""
    B, T, C, H, W = x.shape
    MC = conv_w.shape[0]
    NS = B * T
    CK = C * 9
    CKp = -(-CK // 16) * 16            # sublane-aligned contraction dim (bf16 packs x2)

    # Cast to bf16 BEFORE the 3x im2col expansion (halves wrapper HBM traffic);
    # zero padding on the contraction dim is harmless for the matmul.
    x_bf = x.reshape(NS, C, H, W).astype(jnp.bfloat16)
    patches, OH, OW = _im2col_bf16(x_bf, ck_pad=CKp)     # (NS, CKp, P) bf16
    P = OH * OW

    # conv weight (MC, C, 3, 3) -> (MC, CK) matching patch dim-1 order (c, kh, kw).
    w_mat = conv_w.reshape(MC, CK)
    w_mat = jnp.pad(w_mat, ((0, 0), (0, CKp - CK))).astype(jnp.bfloat16)

    gamma = gn_gamma.reshape(MC, 1).astype(jnp.float32)
    beta = gn_beta.reshape(MC, 1).astype(jnp.float32)

    # Double-buffered per-sample VMEM per grid step: bf16 patches in + f32 out.
    per_sample_bytes = 2 * (CKp * P * 2) + 2 * (MC * P * 4)
    S = _pick_samples_per_block(NS, per_sample_bytes)
    grid = (NS // S,)

    cost = pl.CostEstimate(
        flops=2 * NS * MC * CKp * P,
        transcendentals=NS * MC * P,                       # sigmoid
        bytes_accessed=(NS * CKp * P * 2 + MC * CKp * 2
                        + 2 * MC * 4 + NS * MC * P * 4),
    )

    out = pl.pallas_call(
        _conv_gn_silu_kernel,
        out_shape=jax.ShapeDtypeStruct((NS, MC, P), jnp.float32),
        grid_spec=pltpu.PrefetchScalarGridSpec(
            num_scalar_prefetch=0,
            grid=grid,
            in_specs=[
                pl.BlockSpec((S, CKp, P), lambda i: (i, 0, 0)),
                pl.BlockSpec((MC, CKp), lambda i: (0, 0)),
                pl.BlockSpec((MC, 1), lambda i: (0, 0)),
                pl.BlockSpec((MC, 1), lambda i: (0, 0)),
            ],
            out_specs=pl.BlockSpec((S, MC, P), lambda i: (i, 0, 0)),
        ),
        compiler_params=pltpu.CompilerParams(
            dimension_semantics=("parallel",)),
        cost_estimate=cost,
    )(patches, w_mat, gamma, beta)

    # (NS, MC, P) is already NCHW-ordered: pure reshape, no transpose / HBM shuffle.
    out = out.reshape(B, T, MC, OH, OW)

    # TODO(synk): EncoderLayer(model_channel, heads) is undefined in the reference;
    # the N stacked layers are applied as identity here.
    for _ in range(n_layers):
        pass

    return out


# -----------------------------------------------------------------------------
# Pure-JAX f32 reference (conv -> GroupNorm(1) -> SiLU) for a correctness check
# -----------------------------------------------------------------------------
def _reference(x, conv_w, gn_gamma, gn_beta):
    B, T, C, H, W = x.shape
    MC = conv_w.shape[0]
    xf = x.reshape(B * T, C, H, W)
    y = lax.conv_general_dilated(
        xf, conv_w, window_strides=(2, 2), padding=((1, 1), (1, 1)),
        dimension_numbers=("NCHW", "OIHW", "NCHW"))
    mean = y.mean(axis=(1, 2, 3), keepdims=True)
    var = y.var(axis=(1, 2, 3), keepdims=True)
    yn = (y - mean) * lax.rsqrt(var + 1e-5)
    yn = yn * gn_gamma.reshape(1, MC, 1, 1) + gn_beta.reshape(1, MC, 1, 1)
    out = yn * jax.nn.sigmoid(yn)
    return out.reshape(B, T, MC, y.shape[2], y.shape[3])


if __name__ == "__main__":
    # Small shapes consistent with the module's forward (spatial 32 -> stride-2 conv -> 16x16,
    # which the PyTorch view(..., 16, 16) hard-codes).
    B, T = 2, 4
    channel = 4
    model_channel = 32
    N_layers = 2
    H = W = 32

    key = jax.random.PRNGKey(0)
    kx, kw, kg, kb = jax.random.split(key, 4)

    x = jax.random.normal(kx, (B, T, channel, H, W), dtype=jnp.float32)
    conv_w = jax.random.normal(kw, (model_channel, channel, 3, 3), dtype=jnp.float32) * 0.1
    gn_gamma = 1.0 + 0.05 * jax.random.normal(kg, (model_channel,), dtype=jnp.float32)
    gn_beta = 0.05 * jax.random.normal(kb, (model_channel,), dtype=jnp.float32)

    y = encoder_forward(x, conv_w, gn_gamma, gn_beta, N_layers)
    y = jax.block_until_ready(y)

    assert y.shape == (B, T, model_channel, 16, 16), y.shape
    assert jnp.all(jnp.isfinite(y))

    # Tolerance check vs f32 reference (kernel matmul inputs are bf16).
    y_ref = jax.block_until_ready(_reference(x, conv_w, gn_gamma, gn_beta))
    max_err = float(jnp.max(jnp.abs(y - y_ref)))
    assert max_err < 0.1, f"max abs err vs reference: {max_err}"

    print("KERNEL_OK")
</pallas_src>

<mosaic_0001>
module attributes {stable_mosaic.version = 11 : i64} {
  func.func @_conv_gn_silu_kernel(%arg0: i32, %arg1: memref<4x48x256xbf16, #tpu.memory_space<vmem>>, %arg2: memref<32x48xbf16, #tpu.memory_space<vmem>>, %arg3: memref<32x1xf32, #tpu.memory_space<vmem>>, %arg4: memref<32x1xf32, #tpu.memory_space<vmem>>, %arg5: memref<4x32x256xf32, #tpu.memory_space<vmem>>) attributes {dimension_semantics = [#tpu.dimension_semantics<parallel>], iteration_bounds = array<i64: 2>, scalar_prefetch = 0 : i64, scratch_operands = 0 : i64, tpu.core_type = #tpu.core_type<tc>, window_params = [{transform_indices = @transform_0, window_bounds = array<i64: 4, 48, 256>}, {pipeline_mode = #tpu.pipeline_mode<synchronous>, transform_indices = @transform_1, window_bounds = array<i64: 32, 48>}, {pipeline_mode = #tpu.pipeline_mode<synchronous>, transform_indices = @transform_2, window_bounds = array<i64: 32, 1>}, {pipeline_mode = #tpu.pipeline_mode<synchronous>, transform_indices = @transform_3, window_bounds = array<i64: 32, 1>}, {transform_indices = @transform_4, window_bounds = array<i64: 4, 32, 256>}]} {
    %c0 = arith.constant 0 : index
    %c0_0 = arith.constant 0 : index
    %0 = vector.load %arg2[%c0, %c0_0] : memref<32x48xbf16, #tpu.memory_space<vmem>>, vector<32x48xbf16>
    %c0_1 = arith.constant 0 : index
    %c0_2 = arith.constant 0 : index
    %1 = vector.load %arg3[%c0_1, %c0_2] : memref<32x1xf32, #tpu.memory_space<vmem>>, vector<32x1xf32>
    %c0_3 = arith.constant 0 : index
    %c0_4 = arith.constant 0 : index
    %2 = vector.load %arg4[%c0_3, %c0_4] : memref<32x1xf32, #tpu.memory_space<vmem>>, vector<32x1xf32>
    %c0_i32 = arith.constant 0 : i32
    %3 = arith.index_cast %c0_i32 : i32 to index
    %c0_5 = arith.constant 0 : index
    %c0_6 = arith.constant 0 : index
    %4 = vector.load %arg1[%3, %c0_5, %c0_6] : memref<4x48x256xbf16, #tpu.memory_space<vmem>>, vector<1x48x256xbf16>
    %5 = vector.shape_cast %4 : vector<1x48x256xbf16> to vector<48x256xbf16>
    %cst = arith.constant dense<0.000000e+00> : vector<32x256xf32>
    %6 = tpu.matmul %0, %5, %cst {dimension_numbers = #tpu.dot_dimension_numbers<[1], [0], [0], [1], [0, 0, 1, 1], [], []>} : vector<32x48xbf16>, vector<48x256xbf16>, vector<32x256xf32> -> vector<32x256xf32>
    %7 = vector.shape_cast %6 : vector<32x256xf32> to vector<1x32x256xf32>
    %cst_7 = arith.constant dense<0.000000e+00> : vector<1xf32>
    %8 = vector.multi_reduction <add>, %7, %cst_7 [1, 2] : vector<1x32x256xf32> to vector<1xf32>
    %9 = vector.shape_cast %8 : vector<1xf32> to vector<1x1x1xf32>
    %10 = vector.extract %9[0, 0, 0] : f32 from vector<1x1x1xf32>
    %11 = arith.mulf %6, %6 : vector<32x256xf32>
    %12 = vector.shape_cast %11 : vector<32x256xf32> to vector<1x32x256xf32>
    %cst_8 = arith.constant dense<0.000000e+00> : vector<1xf32>
    %13 = vector.multi_reduction <add>, %12, %cst_8 [1, 2] : vector<1x32x256xf32> to vector<1xf32>
    %14 = vector.shape_cast %13 : vector<1xf32> to vector<1x1x1xf32>
    %15 = vector.extract %14[0, 0, 0] : f32 from vector<1x1x1xf32>
    %cst_9 = arith.constant 1.22070313E-4 : f32
    %16 = arith.mulf %10, %cst_9 : f32
    %cst_10 = arith.constant 1.22070313E-4 : f32
    %17 = arith.mulf %15, %cst_10 : f32
    %18 = arith.mulf %16, %16 : f32
    %19 = arith.subf %17, %18 : f32
    %cst_11 = arith.constant 9.99999974E-6 : f32
    %20 = arith.addf %19, %cst_11 : f32
    %21 = math.rsqrt %20 : f32
    %22 = vector.broadcast %21 : f32 to vector<32x1xf32>
    %23 = arith.mulf %1, %22 : vector<32x1xf32>
    %24 = vector.broadcast %16 : f32 to vector<32x1xf32>
    %25 = arith.mulf %24, %23 : vector<32x1xf32>
    %26 = arith.subf %2, %25 : vector<32x1xf32>
    %27 = vector.broadcast %23 : vector<32x1xf32> to vector<32x256xf32>
    %28 = arith.mulf %6, %27 : vector<32x256xf32>
    %29 = vector.broadcast %26 : vector<32x1xf32> to vector<32x256xf32>
    %30 = arith.addf %28, %29 : vector<32x256xf32>
    %31 = arith.negf %30 : vector<32x256xf32>
    %32 = math.exp %31 : vector<32x256xf32>
    %cst_12 = arith.constant 1.000000e+00 : f32
    %33 = vector.broadcast %cst_12 : f32 to vector<32x256xf32>
    %34 = arith.addf %33, %32 : vector<32x256xf32>
    %35 = arith.divf %33, %34 : vector<32x256xf32>
    %36 = arith.mulf %30, %35 : vector<32x256xf32>
    %37 = arith.index_cast %c0_i32 : i32 to index
    %c0_13 = arith.constant 0 : index
    %c0_14 = arith.constant 0 : index
    %38 = vector.load %arg5[%37, %c0_13, %c0_14] : memref<4x32x256xf32, #tpu.memory_space<vmem>>, vector<1x32x256xf32>
    %39 = vector.shape_cast %38 : vector<1x32x256xf32> to vector<32x256xf32>
    %40 = vector.shape_cast %36 : vector<32x256xf32> to vector<1x32x256xf32>
    tpu.vector_store %arg5[%37, %c0_13, %c0_14], %40 {strides = array<i32>} : memref<4x32x256xf32, #tpu.memory_space<vmem>>, vector<1x32x256xf32>,
    %c1_i32 = arith.constant 1 : i32
    %41 = arith.index_cast %c1_i32 : i32 to index
    %c0_15 = arith.constant 0 : index
    %c0_16 = arith.constant 0 : index
    %42 = vector.load %arg1[%41, %c0_15, %c0_16] : memref<4x48x256xbf16, #tpu.memory_space<vmem>>, vector<1x48x256xbf16>
    %43 = vector.shape_cast %42 : vector<1x48x256xbf16> to vector<48x256xbf16>
    %cst_17 = arith.constant dense<0.000000e+00> : vector<32x256xf32>
    %44 = tpu.matmul %0, %43, %cst_17 {dimension_numbers = #tpu.dot_dimension_numbers<[1], [0], [0], [1], [0, 0, 1, 1], [], []>} : vector<32x48xbf16>, vector<48x256xbf16>, vector<32x256xf32> -> vector<32x256xf32>
    %45 = vector.shape_cast %44 : vector<32x256xf32> to vector<1x32x256xf32>
    %cst_18 = arith.constant dense<0.000000e+00> : vector<1xf32>
    %46 = vector.multi_reduction <add>, %45, %cst_18 [1, 2] : vector<1x32x256xf32> to vector<1xf32>
    %47 = vector.shape_cast %46 : vector<1xf32> to vector<1x1x1xf32>
    %48 = vector.extract %47[0, 0, 0] : f32 from vector<1x1x1xf32>
    %49 = arith.mulf %44, %44 : vector<32x256xf32>
    %50 = vector.shape_cast %49 : vector<32x256xf32> to vector<1x32x256xf32>
    %cst_19 = arith.constant dense<0.000000e+00> : vector<1xf32>
    %51 = vector.multi_reduction <add>, %50, %cst_19 [1, 2] : vector<1x32x256xf32> to vector<1xf32>
    %52 = vector.shape_cast %51 : vector<1xf32> to vector<1x1x1xf32>
    %53 = vector.extract %52[0, 0, 0] : f32 from vector<1x1x1xf32>
    %cst_20 = arith.constant 1.22070313E-4 : f32
    %54 = arith.mulf %48, %cst_20 : f32
    %cst_21 = arith.constant 1.22070313E-4 : f32
    %55 = arith.mulf %53, %cst_21 : f32
    %56 = arith.mulf %54, %54 : f32
    %57 = arith.subf %55, %56 : f32
    %cst_22 = arith.constant 9.99999974E-6 : f32
    %58 = arith.addf %57, %cst_22 : f32
    %59 = math.rsqrt %58 : f32
    %60 = vector.broadcast %59 : f32 to vector<32x1xf32>
    %61 = arith.mulf %1, %60 : vector<32x1xf32>
    %62 = vector.broadcast %54 : f32 to vector<32x1xf32>
    %63 = arith.mulf %62, %61 : vector<32x1xf32>
    %64 = arith.subf %2, %63 : vector<32x1xf32>
    %65 = vector.broadcast %61 : vector<32x1xf32> to vector<32x256xf32>
    %66 = arith.mulf %44, %65 : vector<32x256xf32>
    %67 = vector.broadcast %64 : vector<32x1xf32> to vector<32x256xf32>
    %68 = arith.addf %66, %67 : vector<32x256xf32>
    %69 = arith.negf %68 : vector<32x256xf32>
    %70 = math.exp %69 : vector<32x256xf32>
    %cst_23 = arith.constant 1.000000e+00 : f32
    %71 = vector.broadcast %cst_23 : f32 to vector<32x256xf32>
    %72 = arith.addf %71, %70 : vector<32x256xf32>
    %73 = arith.divf %71, %72 : vector<32x256xf32>
    %74 = arith.mulf %68, %73 : vector<32x256xf32>
    %75 = arith.index_cast %c1_i32 : i32 to index
    %c0_24 = arith.constant 0 : index
    %c0_25 = arith.constant 0 : index
    %76 = vector.load %arg5[%75, %c0_24, %c0_25] : memref<4x32x256xf32, #tpu.memory_space<vmem>>, vector<1x32x256xf32>
    %77 = vector.shape_cast %76 : vector<1x32x256xf32> to vector<32x256xf32>
    %78 = vector.shape_cast %74 : vector<32x256xf32> to vector<1x32x256xf32>
    tpu.vector_store %arg5[%75, %c0_24, %c0_25], %78 {strides = array<i32>} : memref<4x32x256xf32, #tpu.memory_space<vmem>>, vector<1x32x256xf32>,
    %c2_i32 = arith.constant 2 : i32
    %79 = arith.index_cast %c2_i32 : i32 to index
    %c0_26 = arith.constant 0 : index
    %c0_27 = arith.constant 0 : index
    %80 = vector.load %arg1[%79, %c0_26, %c0_27] : memref<4x48x256xbf16, #tpu.memory_space<vmem>>, vector<1x48x256xbf16>
    %81 = vector.shape_cast %80 : vector<1x48x256xbf16> to vector<48x256xbf16>
    %cst_28 = arith.constant dense<0.000000e+00> : vector<32x256xf32>
    %82 = tpu.matmul %0, %81, %cst_28 {dimension_numbers = #tpu.dot_dimension_numbers<[1], [0], [0], [1], [0, 0, 1, 1], [], []>} : vector<32x48xbf16>, vector<48x256xbf16>, vector<32x256xf32> -> vector<32x256xf32>
    %83 = vector.shape_cast %82 : vector<32x256xf32> to vector<1x32x256xf32>
    %cst_29 = arith.constant dense<0.000000e+00> : vector<1xf32>
    %84 = vector.multi_reduction <add>, %83, %cst_29 [1, 2] : vector<1x32x256xf32> to vector<1xf32>
    %85 = vector.shape_cast %84 : vector<1xf32> to vector<1x1x1xf32>
    %86 = vector.extract %85[0, 0, 0] : f32 from vector<1x1x1xf32>
    %87 = arith.mulf %82, %82 : vector<32x256xf32>
    %88 = vector.shape_cast %87 : vector<32x256xf32> to vector<1x32x256xf32>
    %cst_30 = arith.constant dense<0.000000e+00> : vector<1xf32>
    %89 = vector.multi_reduction <add>, %88, %cst_30 [1, 2] : vector<1x32x256xf32> to vector<1xf32>
    %90 = vector.shape_cast %89 : vector<1xf32> to vector<1x1x1xf32>
    %91 = vector.extract %90[0, 0, 0] : f32 from vector<1x1x1xf32>
    %cst_31 = arith.constant 1.22070313E-4 : f32
    %92 = arith.mulf %86, %cst_31 : f32
    %cst_32 = arith.constant 1.22070313E-4 : f32
    %93 = arith.mulf %91, %cst_32 : f32
    %94 = arith.mulf %92, %92 : f32
    %95 = arith.subf %93, %94 : f32
    %cst_33 = arith.constant 9.99999974E-6 : f32
    %96 = arith.addf %95, %cst_33 : f32
    %97 = math.rsqrt %96 : f32
    %98 = vector.broadcast %97 : f32 to vector<32x1xf32>
    %99 = arith.mulf %1, %98 : vector<32x1xf32>
    %100 = vector.broadcast %92 : f32 to vector<32x1xf32>
    %101 = arith.mulf %100, %99 : vector<32x1xf32>
    %102 = arith.subf %2, %101 : vector<32x1xf32>
    %103 = vector.broadcast %99 : vector<32x1xf32> to vector<32x256xf32>
    %104 = arith.mulf %82, %103 : vector<32x256xf32>
    %105 = vector.broadcast %102 : vector<32x1xf32> to vector<32x256xf32>
    %106 = arith.addf %104, %105 : vector<32x256xf32>
    %107 = arith.negf %106 : vector<32x256xf32>
    %108 = math.exp %107 : vector<32x256xf32>
    %cst_34 = arith.constant 1.000000e+00 : f32
    %109 = vector.broadcast %cst_34 : f32 to vector<32x256xf32>
    %110 = arith.addf %109, %108 : vector<32x256xf32>
    %111 = arith.divf %109, %110 : vector<32x256xf32>
    %112 = arith.mulf %106, %111 : vector<32x256xf32>
    %113 = arith.index_cast %c2_i32 : i32 to index
    %c0_35 = arith.constant 0 : index
    %c0_36 = arith.constant 0 : index
    %114 = vector.load %arg5[%113, %c0_35, %c0_36] : memref<4x32x256xf32, #tpu.memory_space<vmem>>, vector<1x32x256xf32>
    %115 = vector.shape_cast %114 : vector<1x32x256xf32> to vector<32x256xf32>
    %116 = vector.shape_cast %112 : vector<32x256xf32> to vector<1x32x256xf32>
    tpu.vector_store %arg5[%113, %c0_35, %c0_36], %116 {strides = array<i32>} : memref<4x32x256xf32, #tpu.memory_space<vmem>>, vector<1x32x256xf32>,
    %c3_i32 = arith.constant 3 : i32
    %117 = arith.index_cast %c3_i32 : i32 to index
    %c0_37 = arith.constant 0 : index
    %c0_38 = arith.constant 0 : index
    %118 = vector.load %arg1[%117, %c0_37, %c0_38] : memref<4x48x256xbf16, #tpu.memory_space<vmem>>, vector<1x48x256xbf16>
    %119 = vector.shape_cast %118 : vector<1x48x256xbf16> to vector<48x256xbf16>
    %cst_39 = arith.constant dense<0.000000e+00> : vector<32x256xf32>
    %120 = tpu.matmul %0, %119, %cst_39 {dimension_numbers = #tpu.dot_dimension_numbers<[1], [0], [0], [1], [0, 0, 1, 1], [], []>} : vector<32x48xbf16>, vector<48x256xbf16>, vector<32x256xf32> -> vector<32x256xf32>
    %121 = vector.shape_cast %120 : vector<32x256xf32> to vector<1x32x256xf32>
    %cst_40 = arith.constant dense<0.000000e+00> : vector<1xf32>
    %122 = vector.multi_reduction <add>, %121, %cst_40 [1, 2] : vector<1x32x256xf32> to vector<1xf32>
    %123 = vector.shape_cast %122 : vector<1xf32> to vector<1x1x1xf32>
    %124 = vector.extract %123[0, 0, 0] : f32 from vector<1x1x1xf32>
    %125 = arith.mulf %120, %120 : vector<32x256xf32>
    %126 = vector.shape_cast %125 : vector<32x256xf32> to vector<1x32x256xf32>
    %cst_41 = arith.constant dense<0.000000e+00> : vector<1xf32>
    %127 = vector.multi_reduction <add>, %126, %cst_41 [1, 2] : vector<1x32x256xf32> to vector<1xf32>
    %128 = vector.shape_cast %127 : vector<1xf32> to vector<1x1x1xf32>
    %129 = vector.extract %128[0, 0, 0] : f32 from vector<1x1x1xf32>
    %cst_42 = arith.constant 1.22070313E-4 : f32
    %130 = arith.mulf %124, %cst_42 : f32
    %cst_43 = arith.constant 1.22070313E-4 : f32
    %131 = arith.mulf %129, %cst_43 : f32
    %132 = arith.mulf %130, %130 : f32
    %133 = arith.subf %131, %132 : f32
    %cst_44 = arith.constant 9.99999974E-6 : f32
    %134 = arith.addf %133, %cst_44 : f32
    %135 = math.rsqrt %134 : f32
    %136 = vector.broadcast %135 : f32 to vector<32x1xf32>
    %137 = arith.mulf %1, %136 : vector<32x1xf32>
    %138 = vector.broadcast %130 : f32 to vector<32x1xf32>
    %139 = arith.mulf %138, %137 : vector<32x1xf32>
    %140 = arith.subf %2, %139 : vector<32x1xf32>
    %141 = vector.broadcast %137 : vector<32x1xf32> to vector<32x256xf32>
    %142 = arith.mulf %120, %141 : vector<32x256xf32>
    %143 = vector.broadcast %140 : vector<32x1xf32> to vector<32x256xf32>
    %144 = arith.addf %142, %143 : vector<32x256xf32>
    %145 = arith.negf %144 : vector<32x256xf32>
    %146 = math.exp %145 : vector<32x256xf32>
    %cst_45 = arith.constant 1.000000e+00 : f32
    %147 = vector.broadcast %cst_45 : f32 to vector<32x256xf32>
    %148 = arith.addf %147, %146 : vector<32x256xf32>
    %149 = arith.divf %147, %148 : vector<32x256xf32>
    %150 = arith.mulf %144, %149 : vector<32x256xf32>
    %151 = arith.index_cast %c3_i32 : i32 to index
    %c0_46 = arith.constant 0 : index
    %c0_47 = arith.constant 0 : index
    %152 = vector.load %arg5[%151, %c0_46, %c0_47] : memref<4x32x256xf32, #tpu.memory_space<vmem>>, vector<1x32x256xf32>
    %153 = vector.shape_cast %152 : vector<1x32x256xf32> to vector<32x256xf32>
    %154 = vector.shape_cast %150 : vector<32x256xf32> to vector<1x32x256xf32>
    tpu.vector_store %arg5[%151, %c0_46, %c0_47], %154 {strides = array<i32>} : memref<4x32x256xf32, #tpu.memory_space<vmem>>, vector<1x32x256xf32>,
    %c4_i32 = arith.constant 4 : i32
    return
  }
  func.func @transform_0(%arg0: i32) -> (i32, i32, i32) {
    %c0_i32 = arith.constant 0 : i32
    %c0_i32_0 = arith.constant 0 : i32
    %c0_i32_1 = arith.constant 0 : i32
    return %arg0, %c0_i32, %c0_i32_0 : i32, i32, i32
  }
  func.func @transform_1(%arg0: i32) -> (i32, i32) {
    %c0_i32 = arith.constant 0 : i32
    %c0_i32_0 = arith.constant 0 : i32
    %c0_i32_1 = arith.constant 0 : i32
    return %c0_i32, %c0_i32_0 : i32, i32
  }
  func.func @transform_2(%arg0: i32) -> (i32, i32) {
    %c0_i32 = arith.constant 0 : i32
    %c0_i32_0 = arith.constant 0 : i32
    %c0_i32_1 = arith.constant 0 : i32
    return %c0_i32, %c0_i32_0 : i32, i32
  }
  func.func @transform_3(%arg0: i32) -> (i32, i32) {
    %c0_i32 = arith.constant 0 : i32
    %c0_i32_0 = arith.constant 0 : i32
    %c0_i32_1 = arith.constant 0 : i32
    return %c0_i32, %c0_i32_0 : i32, i32
  }
  func.func @transform_4(%arg0: i32) -> (i32, i32, i32) {
    %c0_i32 = arith.constant 0 : i32
    %c0_i32_0 = arith.constant 0 : i32
    %c0_i32_1 = arith.constant 0 : i32
    return %arg0, %c0_i32, %c0_i32_0 : i32, i32, i32
  }
}

</mosaic_0001>

<llo_original>
// kernel: tpu_custom_call.1
$region0: #{tpu_custom_call.1}
  #allocation0 [shape = 'u32[]', space=smem, size = 0x4, offset = 0x4, fixed_abs, tag = 'smem constant byte address 0x4 - core index']
  #allocation1 [shape = 'u32[144,128]{1,0:T(1,128)}', space=vmem, size = 0x12000, scoped, tag = 'internal scratch']
  %s0 = inlined_call_operand.hbm [shape: bf16[8,48,256], index: 0, kind: input, shape index: {}]
  %s1 = inlined_call_operand.vmem [shape: bf16[32,48], index: 1, kind: input, shape index: {}]
  %s2 = inlined_call_operand.vmem [shape: f32[32,1], index: 2, kind: input, shape index: {}]
  %s3 = inlined_call_operand.vmem [shape: f32[32,1], index: 3, kind: input, shape index: {}]
  %s4 = inlined_call_operand.hbm [shape: f32[8,32,256], index: 4, kind: output, shape index: {}]
  %s5 = sld [smem:[#allocation0]]
  $region53: #{tpu_custom_call.1} parent=0
    _
  %s7 = ssub.s32 1, %s5
  %s8 = scalar_select 0, %s7, %s5
  $region1: #{tpu_custom_call.1} parent=0
    #allocation2 [shape = 'u8[196608]{0}', space=vmem, size = 0x30000, scoped, tag = 'input window, operand 0']
    #allocation3 [shape = 's32[2]{0}', space=sflag, size = 0x8, scoped, tag = 'scoped memory for tpu_custom_call.1']
    #allocation4 [shape = 's32[2]{0}', space=sflag, size = 0x8, scoped, tag = 'scoped memory for tpu_custom_call.1']
    #allocation5 [shape = 'u8[262144]{0}', space=vmem, size = 0x40000, scoped, tag = 'output window, operand 0']
    %9 = vsyncpa [#allocation3], 0
    %s10 = scalar_lea.sflag [#allocation3], 1
    %11 = vsyncpa %s10, 0
    %12 = vsyncpa [#allocation4], 0
    %s13 = scalar_lea.sflag [#allocation4], 1
    %14 = vsyncpa %s13, 0
    loop: start=0, step=1, limit=4
    $region2: #{tpu_custom_call.1} parent=1 // loop_pre_header
      _
    $region3: #{tpu_custom_call.1} parent=1 // loop_header
      %s16 = sphi 0, %s20
      %p17 = scmp.ge.s32.totalorder %s16, 4
      %s26 = sphi 0, %s28
      %s29 = sphi 0, %s26
      %s30 = sphi 0, %s29
      %s46 = sphi 0, %s30
      %s50 = sphi 0, %s50
      %s52 = sphi 0, %s50
      %s53 = sphi 0, %s52
      %s67 = sphi 0, %s53
      %s71 = sphi 0, %s71
      %s73 = sphi 0, %s71
      %s74 = sphi 0, %s73
      %s88 = sphi 0, %s74
      %s92 = sphi 0, %s92
      %s94 = sphi 0, %s92
      %s95 = sphi 0, %s94
      %s109 = sphi 0, %s95
      %s115 = sphi 0, %s117
      %s118 = sphi 0, %s115
      %s119 = sphi 0, %s118
      %s135 = sphi 0, %s119
    $region4: #{tpu_custom_call.1} parent=1 // loop_header_branch
      %19 = sbr.rel (%p17) target = $region8
    $region5: #{tpu_custom_call.1} parent=1 // loop_body
      %s21 = ssub.s32 %s16, 1
      %s22 = ssub.s32 %s16, 2
      %s23 = sadd.s32 %s16, 1
      %s24 = ssub.s32 %s16, %s23
      %p25 = scmp.eq.s32.totalorder %s24, 0
      %s27 = sadd.s32 %s26, 1
      %s28 = scalar_select %p25, %s26, %s27
      %p31 = pneg %p25
      %p32 = scmp.eq.s32.totalorder %s16, 1
      %p33 = por %p31, %p32
      %p34 = scmp.ne.s32.totalorder %s26, %s29
      %p35 = scmp.eq.s32.totalorder %s16, 0
      %p36 = por %p34, %p35
      %p37 = scmp.ne.s32.totalorder %s26, %s29
      %p38 = scmp.eq.s32.totalorder %s21, 1
      %p39 = por %p37, %p38
      %p40 = scmp.ne.s32.totalorder %s29, %s30
      %p41 = scmp.eq.s32.totalorder %s21, 0
      %p42 = por %p40, %p41
      %p43 = scmp.ne.s32.totalorder %s29, %s30
      %p44 = scmp.eq.s32.totalorder %s22, 1
      %p45 = por %p43, %p44
      %p47 = scmp.ne.s32.totalorder %s30, %s46
      %p48 = scmp.eq.s32.totalorder %s22, 0
      %p49 = por %p47, %p48
      %s51 = sadd.s32 %s50, 1
      %p54 = scmp.eq.s32.totalorder %s16, 1
      %p55 = scmp.ne.s32.totalorder %s50, %s52
      %p56 = scmp.eq.s32.totalorder %s16, 0
      %p57 = por %p55, %p56
      %p58 = scmp.ne.s32.totalorder %s50, %s52
      %p59 = scmp.eq.s32.totalorder %s21, 1
      %p60 = por %p58, %p59
      %p61 = scmp.ne.s32.totalorder %s52, %s53
      %p62 = scmp.eq.s32.totalorder %s21, 0
      %p63 = por %p61, %p62
      %p64 = scmp.ne.s32.totalorder %s52, %s53
      %p65 = scmp.eq.s32.totalorder %s22, 1
      %p66 = por %p64, %p65
      %p68 = scmp.ne.s32.totalorder %s53, %s67
      %p69 = scmp.eq.s32.totalorder %s22, 0
      %p70 = por %p68, %p69
      %s72 = sadd.s32 %s71, 1
      %p75 = scmp.eq.s32.totalorder %s16, 1
      %p76 = scmp.ne.s32.totalorder %s71, %s73
      %p77 = scmp.eq.s32.totalorder %s16, 0
      %p78 = por %p76, %p77
      %p79 = scmp.ne.s32.totalorder %s71, %s73
      %p80 = scmp.eq.s32.totalorder %s21, 1
      %p81 = por %p79, %p80
      %p82 = scmp.ne.s32.totalorder %s73, %s74
      %p83 = scmp.eq.s32.totalorder %s21, 0
      %p84 = por %p82, %p83
      %p85 = scmp.ne.s32.totalorder %s73, %s74
      %p86 = scmp.eq.s32.totalorder %s22, 1
      %p87 = por %p85, %p86
      %p89 = scmp.ne.s32.totalorder %s74, %s88
      %p90 = scmp.eq.s32.totalorder %s22, 0
      %p91 = por %p89, %p90
      %s93 = sadd.s32 %s92, 1
      %p96 = scmp.eq.s32.totalorder %s16, 1
      %p97 = scmp.ne.s32.totalorder %s92, %s94
      %p98 = scmp.eq.s32.totalorder %s16, 0
      %p99 = por %p97, %p98
      %p100 = scmp.ne.s32.totalorder %s92, %s94
      %p101 = scmp.eq.s32.totalorder %s21, 1
      %p102 = por %p100, %p101
      %p103 = scmp.ne.s32.totalorder %s94, %s95
      %p104 = scmp.eq.s32.totalorder %s21, 0
      %p105 = por %p103, %p104
      %p106 = scmp.ne.s32.totalorder %s94, %s95
      %p107 = scmp.eq.s32.totalorder %s22, 1
      %p108 = por %p106, %p107
      %p110 = scmp.ne.s32.totalorder %s95, %s109
      %p111 = scmp.eq.s32.totalorder %s22, 0
      %p112 = por %p110, %p111
      %s113 = ssub.s32 %s16, %s23
      %p114 = scmp.eq.s32.totalorder %s113, 0
      %s116 = sadd.s32 %s115, 1
      %s117 = scalar_select %p114, %s115, %s116
      %p120 = pneg %p114
      %p121 = scmp.eq.s32.totalorder %s16, 1
      %p122 = por %p120, %p121
      %p123 = scmp.ne.s32.totalorder %s115, %s118
      %p124 = scmp.eq.s32.totalorder %s16, 0
      %p125 = por %p123, %p124
      %p126 = scmp.ne.s32.totalorder %s115, %s118
      %p127 = scmp.eq.s32.totalorder %s21, 1
      %p128 = por %p126, %p127
      %p129 = scmp.ne.s32.totalorder %s118, %s119
      %p130 = scmp.eq.s32.totalorder %s21, 0
      %p131 = por %p129, %p130
      %p132 = scmp.ne.s32.totalorder %s118, %s119
      %p133 = scmp.eq.s32.totalorder %s22, 1
      %p134 = por %p132, %p133
      %p136 = scmp.ne.s32.totalorder %s119, %s135
      %p137 = scmp.eq.s32.totalorder %s22, 0
      %p138 = por %p136, %p137
      %p139 = scmp.le.s32.totalorder 1, %s16
      %p140 = scmp.lt.s32.totalorder %s16, 3
      %p141 = pnand %p139, %p140
      %p142 = pneg %p141
      // Predicated region
      $region9: #{tpu_custom_call.1} parent=5 // pred_check
        _
      $region10: #{tpu_custom_call.1} parent=5 // pred_check_branch
        %144 = sbr.rel (%p141) target = $region12
      $region11: #{tpu_custom_call.1} parent=5 // pred_region
        %s145 = ssub.s32 %s16, 1
        // Predicated region
        $region13: #{tpu_custom_call.1} parent=11 // pred_check
          %p146 = pneg %p63
        $region14: #{tpu_custom_call.1} parent=11 // pred_check_branch
          %148 = sbr.rel (%p146) target = $region16
        $region15: #{tpu_custom_call.1} parent=11 // pred_region
          _
        $region16: #{tpu_custom_call.1} parent=11 // pred_fallthru
          _
        // Predicated region
        $region17: #{tpu_custom_call.1} parent=11 // pred_check
          %p149 = pneg %p84
        $region18: #{tpu_custom_call.1} parent=11 // pred_check_branch
          %151 = sbr.rel (%p149) target = $region20
        $region19: #{tpu_custom_call.1} parent=11 // pred_region
          _
        $region20: #{tpu_custom_call.1} parent=11 // pred_fallthru
          _
        // Predicated region
        $region21: #{tpu_custom_call.1} parent=11 // pred_check
          %p152 = pneg %p105
        $region22: #{tpu_custom_call.1} parent=11 // pred_check_branch
          %154 = sbr.rel (%p152) target = $region24
        $region23: #{tpu_custom_call.1} parent=11 // pred_region
          _
        $region24: #{tpu_custom_call.1} parent=11 // pred_fallthru
          _
      $region12: #{tpu_custom_call.1} parent=5 // pred_fallthru
        _
      %p155 = scmp.lt.s32.totalorder %s16, 2
      // Predicated region
      $region25: #{tpu_custom_call.1} parent=5 // pred_check
        %p156 = pneg %p155
      $region26: #{tpu_custom_call.1} parent=5 // pred_check_branch
        %158 = sbr.rel (%p156) target = $region28
      $region27: #{tpu_custom_call.1} parent=5 // pred_region
        // Predicated region
        $region29: #{tpu_custom_call.1} parent=27 // pred_check
          %p159 = pneg %p36
        $region30: #{tpu_custom_call.1} parent=27 // pred_check_branch
          %161 = sbr.rel (%p159) target = $region32
        $region31: #{tpu_custom_call.1} parent=27 // pred_region
          %s162 = sand.u32 %s26, 1
          %s163 = scalar_lea.sflag [#allocation3], %s162
          %s164 = sand.u32 %s26, 1
          %s165 = smul.addr %s164, 192
          %s166 = scalar_lea.vmem [#allocation2], %s165
          %s167 = smul.u32 4, %s16
          %s169 = ssub.s32 3072, 3072
          %170 = vsyncadd %s163, %s169
          %s171 = smul.addr %s167, 12
          %s172 = smul.addr %s171, 64
          %s173 = scalar_lea.hbm %s0, %s172
          %s174 = sshll.u32 %s166, 4
          %s175 = int_to_ptr.vmem [resolvable:$true] %s174
          %180 = dma.hbm_to_vmem [thread:$0]  %s173, 3072, %s175, %s163, 128, 128, 8
        $region32: #{tpu_custom_call.1} parent=27 // pred_fallthru
          _
      $region28: #{tpu_custom_call.1} parent=5 // pred_fallthru
        _
      %p181 = scmp.le.s32.totalorder 1, %s16
      %p182 = scmp.lt.s32.totalorder %s16, 3
      %p183 = pnand %p181, %p182
      %p184 = pneg %p183
      // Predicated region
      $region33: #{tpu_custom_call.1} parent=5 // pred_check
        _
      $region34: #{tpu_custom_call.1} parent=5 // pred_check_branch
        %186 = sbr.rel (%p183) target = $region36
      $region35: #{tpu_custom_call.1} parent=5 // pred_region
        %s187 = ssub.s32 %s16, 1
        %s188 = sand.u32 %s29, 1
        %s189 = scalar_lea.sflag [#allocation3], %s188
        %s190 = sand.u32 %s29, 1
        %s191 = smul.addr %s190, 192
        %s192 = scalar_lea.vmem [#allocation2], %s191
        // Predicated region
        $region37: #{tpu_custom_call.1} parent=35 // pred_check
          %p193 = pneg %p42
        $region38: #{tpu_custom_call.1} parent=35 // pred_check_branch
          %195 = sbr.rel (%p193) target = $region40
        $region39: #{tpu_custom_call.1} parent=35 // pred_region
          %196 = dma.done %s189, 3072
        $region40: #{tpu_custom_call.1} parent=35 // pred_fallthru
          _
        %s197 = sand.u32 %s29, 1
        %s198 = scalar_lea.sflag [#allocation3], %s197
        %s199 = sand.u32 %s29, 1
        %s200 = smul.addr %s199, 192
        %s201 = scalar_lea.vmem [#allocation2], %s200
        %p202 = pneg %p42
        %p203 = pneg %p39
        %p204 = pneg %p63
        %p205 = pneg %p60
        %p206 = pneg %p84
        %p207 = pneg %p81
        %p208 = pneg %p105
        %p209 = pneg %p102
        %p210 = pneg %p131
        %p211 = pneg %p128
        %s212 = sand.u32 %s118, 1
        %s213 = scalar_lea.sflag [#allocation4], %s212
        %s214 = sand.u32 %s118, 1
        %s215 = smul.addr %s214, 256
        %s216 = scalar_lea.vmem [#allocation5], %s215
        %s217 = smul.u32 4, %s21
        %s218 = smul.u32 4, %s21
        %v220 = vld [vmem:[%s1] sm:$0xf]
        %v221 = vld [vmem:[%s1 + $0x4] sm:$0xf]
        %v222 = vld [vmem:[%s1 + $0x8] sm:$0xf]
        %v223 = vld [vmem:[%s1 + $0xc] sm:$0xf]
        %v224 = vld [vmem:[%s2] sm:$0xff]
        %v225 = vld [vmem:[%s2 + $0x8] sm:$0xff]
        %v226 = vld [vmem:[%s2 + $0x10] sm:$0xff]
        %v227 = vld [vmem:[%s2 + $0x18] sm:$0xff]
        %v228 = vld [vmem:[%s3] sm:$0xff]
        %v229 = vld [vmem:[%s3 + $0x8] sm:$0xff]
        %v230 = vld [vmem:[%s3 + $0x10] sm:$0xff]
        %v231 = vld [vmem:[%s3 + $0x18] sm:$0xff]
        %v232 = vld [vmem:[%s192] sm:$0xff]
        %v233 = vld [vmem:[%s192 + $0x8] sm:$0xff]
        %v234 = vld [vmem:[%s192 + $0x10] sm:$0xff]
        %v235 = vld [vmem:[%s192 + $0x18] sm:$0xff]
        %v236 = vld [vmem:[%s192 + $0x20] sm:$0xff]
        %v237 = vld [vmem:[%s192 + $0x28] sm:$0xff]
        %v242 = vunpack.c.l.b16 %v220
        %v243 = vunpack.c.l.b16 %v221
        %v244 = vunpack.c.l.b16 %v222
        %v245 = vunpack.c.l.b16 %v223
        %v246 = vpack.c.b16 %v243, %v242
        %v247 = vpack.c.b16 %v245, %v244
        %v254 = vunpack.c.l.b16 %v232
        %v255 = vunpack.c.h.b16 %v232
        %v256 = vunpack.c.l.b16 %v233
        %v257 = vunpack.c.h.b16 %v233
        %v258 = vunpack.c.l.b16 %v234
        %v259 = vunpack.c.h.b16 %v234
        %v260 = vunpack.c.l.b16 %v235
        %v261 = vunpack.c.h.b16 %v235
        %v262 = vunpack.c.l.b16 %v236
        %v263 = vunpack.c.h.b16 %v236
        %v264 = vunpack.c.l.b16 %v237
        %v265 = vunpack.c.h.b16 %v237
        %v266 = vpack.c.b16 %v256, %v254
        %v267 = vpack.c.b16 %v257, %v255
        %v268 = vpack.c.b16 %v260, %v258
        %v269 = vpack.c.b16 %v261, %v259
        %v270 = vpack.c.b16 %v264, %v262
        %v271 = vpack.c.b16 %v265, %v263
        %vm278 = vcmask 392192
        %v280 = vsel %vm278, %v246, 0
        %v283 = vsel %vm278, %v247, 0
        %285 = vmatprep.subr.bf16.mxu0 0
        %286 = vmatpush1.bf16.msra.mxu0 0
        %287 = vmatprep.subr.bf16.mxu0 0
        %288 = vmatpush1.bf16.msra.mxu0 0
        %289 = vmatprep.subr.bf16.mxu0 0
        %290 = vmatpush1.bf16.msra.mxu0 0
        %291 = vmatprep.subr.bf16.mxu0 0
        %292 = vmatpush1.bf16.msra.mxu0 0
        %293 = vmatprep.subr.bf16.mxu0 0
        %294 = vmatpush1.bf16.msra.mxu0 0
        %295 = vmatprep.subr.bf16.mxu0 %v271
        %296 = vmatpush1.bf16.msra.mxu0 %v270
        %297 = vmatprep.subr.bf16.mxu0 %v269
        %298 = vmatpush1.bf16.msra.mxu0 %v268
        %299 = vmatprep.subr.bf16.mxu0 %v267
        %300 = vmatpush1.bf16.msra.mxu0 %v266
        %301 = vmatprep.subr.bf16.mxu0 0
        %302 = vmatpush2.bf16.msra.mxu0 0
        %303 = vmatprep.subr.bf16.mxu0 0
        %304 = vmatpush2.bf16.msra.mxu0 0
        %305 = vmatprep.subr.bf16.mxu0 0
        %306 = vmatpush2.bf16.msra.mxu0 0
        %307 = vmatprep.subr.bf16.mxu0 0
        %308 = vmatpush2.bf16.msra.mxu0 0
        %309 = vmatprep.subr.bf16.mxu0 0
        %310 = vmatpush2.bf16.msra.mxu0 0
        %311 = vmatprep.subr.bf16.mxu0 0
        %312 = vmatpush2.bf16.msra.mxu0 0
        %313 = vmatprep.subr.bf16.mxu0 0
        %314 = vmatpush2.bf16.msra.mxu0 0
        %315 = vmatprep.subr.bf16.mxu0 0
        %316 = vmatpush2.bf16.msra.mxu0 0
        %317 = vmatprep.mubr.bf16.mxu0 0
        %318 = vmatmul.mubr.bf16.gmra.mxu0 %v280
        %v319 = vpop.f32.mrf.mxu0
        %v320 = vadd.f32 0.0, %v319
        %v321 = vpop.f32.mrf.mxu0
        %v322 = vadd.f32 0.0, %v321
        %v323 = vpop.f32.mrf.mxu0
        %v324 = vadd.f32 0.0, %v323
        %v325 = vpop.f32.mrf.mxu0
        %v326 = vadd.f32 0.0, %v325
        %327 = vmatprep.mubr.bf16.mxu0 0
        %328 = vmatmul.mubr.bf16.gmra.mxu0 %v283
        %v329 = vpop.f32.mrf.mxu0
        %v330 = vadd.f32 0.0, %v329
        %v331 = vpop.f32.mrf.mxu0
        %v332 = vadd.f32 0.0, %v331
        %v333 = vpop.f32.mrf.mxu0
        %v334 = vadd.f32 0.0, %v333
        %v335 = vpop.f32.mrf.mxu0
        %v336 = vadd.f32 0.0, %v335
        %337 = vdwg.mxu0
        %v338 = vadd.f32 %v320, %v322
        %v339 = vadd.f32 %v338, %v324
        %v340 = vadd.f32 %v339, %v326
        %v341 = vadd.f32 %v340, %v330
        %v342 = vadd.f32 %v341, %v332
        %v343 = vadd.f32 %v342, %v334
        %v344 = vadd.f32 %v343, %v336
        %345 = vadd.xlane.f32.xlu0 %v344
        %v346 = vpop.xlane.xlu0 %345
        %v347 = vrot.slane %v346, 4
        %v348 = vadd.f32 %v346, %v347
        %v349 = vrot.slane %v348, 2
        %v350 = vadd.f32 %v348, %v349
        %v351 = vrot.slane %v350, 1
        %v352 = vadd.f32 %v350, %v351
        %s353 = vtos %v352
        %v354 = vmul.f32 %v320, %v320
        %v355 = vmul.f32 %v322, %v322
        %v356 = vmul.f32 %v324, %v324
        %v357 = vmul.f32 %v326, %v326
        %v358 = vmul.f32 %v330, %v330
        %v359 = vmul.f32 %v332, %v332
        %v360 = vmul.f32 %v334, %v334
        %v361 = vmul.f32 %v336, %v336
        %v362 = vadd.f32 %v354, %v355
        %v363 = vadd.f32 %v362, %v356
        %v364 = vadd.f32 %v363, %v357
        %v365 = vadd.f32 %v364, %v358
        %v366 = vadd.f32 %v365, %v359
        %v367 = vadd.f32 %v366, %v360
        %v368 = vadd.f32 %v367, %v361
        %369 = vadd.xlane.f32.xlu0 %v368
        %v370 = vpop.xlane.xlu0 %369
        %v371 = vrot.slane %v370, 4
        %v372 = vadd.f32 %v370, %v371
        %v373 = vrot.slane %v372, 2
        %v374 = vadd.f32 %v372, %v373
        %v375 = vrot.slane %v374, 1
        %v376 = vadd.f32 %v374, %v375
        %s377 = vtos %v376
        %s378 = smul.f32 %s353, 0.00012207031
        %s379 = smul.f32 %s377, 0.00012207031
        %s380 = smul.f32 %s378, %s378
        %s381 = ssub.f32 %s379, %s380
        %s382 = sadd.f32 %s381, 1e-05
        %v383 = vstv %s382
        %v384 = vrsqrt.pop %v383
        %s385 = vtos %v384
        %v386 = vstv %s385
        %v387 = vmul.f32 %v224, %v386
        %v388 = vmul.f32 %v225, %v386
        %v389 = vmul.f32 %v226, %v386
        %v390 = vmul.f32 %v227, %v386
        %v391 = vstv %s378
        %v392 = vmul.f32 %v391, %v387
        %v393 = vmul.f32 %v391, %v388
        %v394 = vmul.f32 %v391, %v389
        %v395 = vmul.f32 %v391, %v390
        %v396 = vsub.f32 %v228, %v392
        %v397 = vsub.f32 %v229, %v393
        %v398 = vsub.f32 %v230, %v394
        %v399 = vsub.f32 %v231, %v395
        %401 = vset.pattern.permute.xlu0 0
        %402 = vperm.xlu0 %401, %v387
        %v403 = vpop.permute.xlu0 %402
        %406 = vset.pattern.permute.xlu0 0
        %407 = vperm.xlu0 %406, %v388
        %v408 = vpop.permute.xlu0 %407
        %411 = vset.pattern.permute.xlu0 0
        %412 = vperm.xlu0 %411, %v389
        %v413 = vpop.permute.xlu0 %412
        %416 = vset.pattern.permute.xlu0 0
        %417 = vperm.xlu0 %416, %v390
        %v418 = vpop.permute.xlu0 %417
        %v420 = vmul.f32 %v320, %v403
        %v421 = vmul.f32 %v322, %v403
        %v422 = vmul.f32 %v324, %v408
        %v423 = vmul.f32 %v326, %v408
        %v424 = vmul.f32 %v330, %v413
        %v425 = vmul.f32 %v332, %v413
        %v426 = vmul.f32 %v334, %v418
        %v427 = vmul.f32 %v336, %v418
        %429 = vset.pattern.permute.xlu0 0
        %430 = vperm.xlu0 %429, %v396
        %v431 = vpop.permute.xlu0 %430
        %434 = vset.pattern.permute.xlu0 0
        %435 = vperm.xlu0 %434, %v397
        %v436 = vpop.permute.xlu0 %435
        %439 = vset.pattern.permute.xlu0 0
        %440 = vperm.xlu0 %439, %v398
        %v441 = vpop.permute.xlu0 %440
        %444 = vset.pattern.permute.xlu0 0
        %445 = vperm.xlu0 %444, %v399
        %v446 = vpop.permute.xlu0 %445
        %v448 = vadd.f32 %v420, %v431
        %v449 = vadd.f32 %v421, %v431
        %v450 = vadd.f32 %v422, %v436
        %v451 = vadd.f32 %v423, %v436
        %v452 = vadd.f32 %v424, %v441
        %v453 = vadd.f32 %v425, %v441
        %v454 = vadd.f32 %v426, %v446
        %v455 = vadd.f32 %v427, %v446
        %v456 = vxor.u32 %v448, 2147483648
        %v457 = vxor.u32 %v449, 2147483648
        %v458 = vxor.u32 %v450, 2147483648
        %v459 = vxor.u32 %v451, 2147483648
        %v460 = vxor.u32 %v452, 2147483648
        %v461 = vxor.u32 %v453, 2147483648
        %v462 = vxor.u32 %v454, 2147483648
        %v463 = vxor.u32 %v455, 2147483648
        %v464 = vmul.f32 %v456, 1.442695
        %v465 = vpow.pop %v464
        %v466 = vmul.f32 %v457, 1.442695
        %v467 = vpow.pop %v466
        %v468 = vmul.f32 %v458, 1.442695
        %v469 = vpow.pop %v468
        %v470 = vmul.f32 %v459, 1.442695
        %v471 = vpow.pop %v470
        %v472 = vmul.f32 %v460, 1.442695
        %v473 = vpow.pop %v472
        %v474 = vmul.f32 %v461, 1.442695
        %v475 = vpow.pop %v474
        %v476 = vmul.f32 %v462, 1.442695
        %v477 = vpow.pop %v476
        %v478 = vmul.f32 %v463, 1.442695
        %v479 = vpow.pop %v478
        %v480 = vadd.f32 %v465, 1.0
        %v481 = vadd.f32 %v467, 1.0
        %v482 = vadd.f32 %v469, 1.0
        %v483 = vadd.f32 %v471, 1.0
        %v484 = vadd.f32 %v473, 1.0
        %v485 = vadd.f32 %v475, 1.0
        %v486 = vadd.f32 %v477, 1.0
        %v487 = vadd.f32 %v479, 1.0
        %v488 = vrcp.pop %v480
        %v489 = vmul.f32 1.0, %v488
        %v490 = vrcp.pop %v481
        %v491 = vmul.f32 1.0, %v490
        %v492 = vrcp.pop %v482
        %v493 = vmul.f32 1.0, %v492
        %v494 = vrcp.pop %v483
        %v495 = vmul.f32 1.0, %v494
        %v496 = vrcp.pop %v484
        %v497 = vmul.f32 1.0, %v496
        %v498 = vrcp.pop %v485
        %v499 = vmul.f32 1.0, %v498
        %v500 = vrcp.pop %v486
        %v501 = vmul.f32 1.0, %v500
        %v502 = vrcp.pop %v487
        %v503 = vmul.f32 1.0, %v502
        %v504 = vmul.f32 %v448, %v489
        %v505 = vmul.f32 %v449, %v491
        %v506 = vmul.f32 %v450, %v493
        %v507 = vmul.f32 %v451, %v495
        %v508 = vmul.f32 %v452, %v497
        %v509 = vmul.f32 %v453, %v499
        %v510 = vmul.f32 %v454, %v501
        %v511 = vmul.f32 %v455, %v503
        %512 = vst [vmem:[%s216] sm:$0xff] %v504
        %513 = vst [vmem:[%s216 + $0x8] sm:$0xff] %v505
        %514 = vst [vmem:[%s216 + $0x10] sm:$0xff] %v506
        %515 = vst [vmem:[%s216 + $0x18] sm:$0xff] %v507
        %516 = vst [vmem:[%s216 + $0x20] sm:$0xff] %v508
        %517 = vst [vmem:[%s216 + $0x28] sm:$0xff] %v509
        %518 = vst [vmem:[%s216 + $0x30] sm:$0xff] %v510
        %519 = vst [vmem:[%s216 + $0x38] sm:$0xff] %v511
        %s520 = scalar_lea.vmem %s192, 48 [#allocation2]
        %v521 = vld [vmem:[%s520] sm:$0xff]
        %v522 = vld [vmem:[%s520 + $0x8] sm:$0xff]
        %v523 = vld [vmem:[%s520 + $0x10] sm:$0xff]
        %v524 = vld [vmem:[%s520 + $0x18] sm:$0xff]
        %v525 = vld [vmem:[%s520 + $0x20] sm:$0xff]
        %v526 = vld [vmem:[%s520 + $0x28] sm:$0xff]
        %v533 = vunpack.c.l.b16 %v521
        %v534 = vunpack.c.h.b16 %v521
        %v535 = vunpack.c.l.b16 %v522
        %v536 = vunpack.c.h.b16 %v522
        %v537 = vunpack.c.l.b16 %v523
        %v538 = vunpack.c.h.b16 %v523
        %v539 = vunpack.c.l.b16 %v524
        %v540 = vunpack.c.h.b16 %v524
        %v541 = vunpack.c.l.b16 %v525
        %v542 = vunpack.c.h.b16 %v525
        %v543 = vunpack.c.l.b16 %v526
        %v544 = vunpack.c.h.b16 %v526
        %v545 = vpack.c.b16 %v535, %v533
        %v546 = vpack.c.b16 %v536, %v534
        %v547 = vpack.c.b16 %v539, %v537
        %v548 = vpack.c.b16 %v540, %v538
        %v549 = vpack.c.b16 %v543, %v541
        %v550 = vpack.c.b16 %v544, %v542
        %557 = vmatprep.subr.bf16.mxu0 0
        %558 = vmatpush1.bf16.msra.mxu0 0
        %559 = vmatprep.subr.bf16.mxu0 0
        %560 = vmatpush1.bf16.msra.mxu0 0
        %561 = vmatprep.subr.bf16.mxu0 0
        %562 = vmatpush1.bf16.msra.mxu0 0
        %563 = vmatprep.subr.bf16.mxu0 0
        %564 = vmatpush1.bf16.msra.mxu0 0
        %565 = vmatprep.subr.bf16.mxu0 0
        %566 = vmatpush1.bf16.msra.mxu0 0
        %567 = vmatprep.subr.bf16.mxu0 %v550
        %568 = vmatpush1.bf16.msra.mxu0 %v549
        %569 = vmatprep.subr.bf16.mxu0 %v548
        %570 = vmatpush1.bf16.msra.mxu0 %v547
        %571 = vmatprep.subr.bf16.mxu0 %v546
        %572 = vmatpush1.bf16.msra.mxu0 %v545
        %573 = vmatprep.subr.bf16.mxu0 0
        %574 = vmatpush2.bf16.msra.mxu0 0
        %575 = vmatprep.subr.bf16.mxu0 0
        %576 = vmatpush2.bf16.msra.mxu0 0
        %577 = vmatprep.subr.bf16.mxu0 0
        %578 = vmatpush2.bf16.msra.mxu0 0
        %579 = vmatprep.subr.bf16.mxu0 0
        %580 = vmatpush2.bf16.msra.mxu0 0
        %581 = vmatprep.subr.bf16.mxu0 0
        %582 = vmatpush2.bf16.msra.mxu0 0
        %583 = vmatprep.subr.bf16.mxu0 0
        %584 = vmatpush2.bf16.msra.mxu0 0
        %585 = vmatprep.subr.bf16.mxu0 0
        %586 = vmatpush2.bf16.msra.mxu0 0
        %587 = vmatprep.subr.bf16.mxu0 0
        %588 = vmatpush2.bf16.msra.mxu0 0
        %589 = vmatprep.mubr.bf16.mxu0 0
        %590 = vmatmul.mubr.bf16.gmra.mxu0 %v280
        %v591 = vpop.f32.mrf.mxu0
        %v592 = vadd.f32 0.0, %v591
        %v593 = vpop.f32.mrf.mxu0
        %v594 = vadd.f32 0.0, %v593
        %v595 = vpop.f32.mrf.mxu0
        %v596 = vadd.f32 0.0, %v595
        %v597 = vpop.f32.mrf.mxu0
        %v598 = vadd.f32 0.0, %v597
        %599 = vmatprep.mubr.bf16.mxu0 0
        %600 = vmatmul.mubr.bf16.gmra.mxu0 %v283
        %v601 = vpop.f32.mrf.mxu0
        %v602 = vadd.f32 0.0, %v601
        %v603 = vpop.f32.mrf.mxu0
        %v604 = vadd.f32 0.0, %v603
        %v605 = vpop.f32.mrf.mxu0
        %v606 = vadd.f32 0.0, %v605
        %v607 = vpop.f32.mrf.mxu0
        %v608 = vadd.f32 0.0, %v607
        %609 = vdwg.mxu0
        %v610 = vadd.f32 %v592, %v594
        %v611 = vadd.f32 %v610, %v596
        %v612 = vadd.f32 %v611, %v598
        %v613 = vadd.f32 %v612, %v602
        %v614 = vadd.f32 %v613, %v604
        %v615 = vadd.f32 %v614, %v606
        %v616 = vadd.f32 %v615, %v608
        %617 = vadd.xlane.f32.xlu0 %v616
        %v618 = vpop.xlane.xlu0 %617
        %v619 = vrot.slane %v618, 4
        %v620 = vadd.f32 %v618, %v619
        %v621 = vrot.slane %v620, 2
        %v622 = vadd.f32 %v620, %v621
        %v623 = vrot.slane %v622, 1
        %v624 = vadd.f32 %v622, %v623
        %s625 = vtos %v624
        %v626 = vmul.f32 %v592, %v592
        %v627 = vmul.f32 %v594, %v594
        %v628 = vmul.f32 %v596, %v596
        %v629 = vmul.f32 %v598, %v598
        %v630 = vmul.f32 %v602, %v602
        %v631 = vmul.f32 %v604, %v604
        %v632 = vmul.f32 %v606, %v606
        %v633 = vmul.f32 %v608, %v608
        %v634 = vadd.f32 %v626, %v627
        %v635 = vadd.f32 %v634, %v628
        %v636 = vadd.f32 %v635, %v629
        %v637 = vadd.f32 %v636, %v630
        %v638 = vadd.f32 %v637, %v631
        %v639 = vadd.f32 %v638, %v632
        %v640 = vadd.f32 %v639, %v633
        %641 = vadd.xlane.f32.xlu0 %v640
        %v642 = vpop.xlane.xlu0 %641
        %v643 = vrot.slane %v642, 4
        %v644 = vadd.f32 %v642, %v643
        %v645 = vrot.slane %v644, 2
        %v646 = vadd.f32 %v644, %v645
        %v647 = vrot.slane %v646, 1
        %v648 = vadd.f32 %v646, %v647
        %s649 = vtos %v648
        %s650 = smul.f32 %s625, 0.00012207031
        %s651 = smul.f32 %s649, 0.00012207031
        %s652 = smul.f32 %s650, %s650
        %s653 = ssub.f32 %s651, %s652
        %s654 = sadd.f32 %s653, 1e-05
        %v655 = vstv %s654
        %v656 = vrsqrt.pop %v655
        %s657 = vtos %v656
        %v658 = vstv %s657
        %v659 = vmul.f32 %v224, %v658
        %v660 = vmul.f32 %v225, %v658
        %v661 = vmul.f32 %v226, %v658
        %v662 = vmul.f32 %v227, %v658
        %v663 = vstv %s650
        %v664 = vmul.f32 %v663, %v659
        %v665 = vmul.f32 %v663, %v660
        %v666 = vmul.f32 %v663, %v661
        %v667 = vmul.f32 %v663, %v662
        %v668 = vsub.f32 %v228, %v664
        %v669 = vsub.f32 %v229, %v665
        %v670 = vsub.f32 %v230, %v666
        %v671 = vsub.f32 %v231, %v667
        %673 = vset.pattern.permute.xlu0 0
        %674 = vperm.xlu0 %673, %v659
        %v675 = vpop.permute.xlu0 %674
        %678 = vset.pattern.permute.xlu0 0
        %679 = vperm.xlu0 %678, %v660
        %v680 = vpop.permute.xlu0 %679
        %683 = vset.pattern.permute.xlu0 0
        %684 = vperm.xlu0 %683, %v661
        %v685 = vpop.permute.xlu0 %684
        %688 = vset.pattern.permute.xlu0 0
        %689 = vperm.xlu0 %688, %v662
        %v690 = vpop.permute.xlu0 %689
        %v692 = vmul.f32 %v592, %v675
        %v693 = vmul.f32 %v594, %v675
        %v694 = vmul.f32 %v596, %v680
        %v695 = vmul.f32 %v598, %v680
        %v696 = vmul.f32 %v602, %v685
        %v697 = vmul.f32 %v604, %v685
        %v698 = vmul.f32 %v606, %v690
        %v699 = vmul.f32 %v608, %v690
        %701 = vset.pattern.permute.xlu0 0
        %702 = vperm.xlu0 %701, %v668
        %v703 = vpop.permute.xlu0 %702
        %706 = vset.pattern.permute.xlu0 0
        %707 = vperm.xlu0 %706, %v669
        %v708 = vpop.permute.xlu0 %707
        %711 = vset.pattern.permute.xlu0 0
        %712 = vperm.xlu0 %711, %v670
        %v713 = vpop.permute.xlu0 %712
        %716 = vset.pattern.permute.xlu0 0
        %717 = vperm.xlu0 %716, %v671
        %v718 = vpop.permute.xlu0 %717
        %v720 = vadd.f32 %v692, %v703
        %v721 = vadd.f32 %v693, %v703
        %v722 = vadd.f32 %v694, %v708
        %v723 = vadd.f32 %v695, %v708
        %v724 = vadd.f32 %v696, %v713
        %v725 = vadd.f32 %v697, %v713
        %v726 = vadd.f32 %v698, %v718
        %v727 = vadd.f32 %v699, %v718
        %v728 = vxor.u32 %v720, 2147483648
        %v729 = vxor.u32 %v721, 2147483648
        %v730 = vxor.u32 %v722, 2147483648
        %v731 = vxor.u32 %v723, 2147483648
        %v732 = vxor.u32 %v724, 2147483648
        %v733 = vxor.u32 %v725, 2147483648
        %v734 = vxor.u32 %v726, 2147483648
        %v735 = vxor.u32 %v727, 2147483648
        %v736 = vmul.f32 %v728, 1.442695
        %v737 = vpow.pop %v736
        %v738 = vmul.f32 %v729, 1.442695
        %v739 = vpow.pop %v738
        %v740 = vmul.f32 %v730, 1.442695
        %v741 = vpow.pop %v740
        %v742 = vmul.f32 %v731, 1.442695
        %v743 = vpow.pop %v742
        %v744 = vmul.f32 %v732, 1.442695
        %v745 = vpow.pop %v744
        %v746 = vmul.f32 %v733, 1.442695
        %v747 = vpow.pop %v746
        %v748 = vmul.f32 %v734, 1.442695
        %v749 = vpow.pop %v748
        %v750 = vmul.f32 %v735, 1.442695
        %v751 = vpow.pop %v750
        %v752 = vadd.f32 %v737, 1.0
        %v753 = vadd.f32 %v739, 1.0
        %v754 = vadd.f32 %v741, 1.0
        %v755 = vadd.f32 %v743, 1.0
        %v756 = vadd.f32 %v745, 1.0
        %v757 = vadd.f32 %v747, 1.0
        %v758 = vadd.f32 %v749, 1.0
        %v759 = vadd.f32 %v751, 1.0
        %v760 = vrcp.pop %v752
        %v761 = vmul.f32 1.0, %v760
        %v762 = vrcp.pop %v753
        %v763 = vmul.f32 1.0, %v762
        %v764 = vrcp.pop %v754
        %v765 = vmul.f32 1.0, %v764
        %v766 = vrcp.pop %v755
        %v767 = vmul.f32 1.0, %v766
        %v768 = vrcp.pop %v756
        %v769 = vmul.f32 1.0, %v768
        %v770 = vrcp.pop %v757
        %v771 = vmul.f32 1.0, %v770
        %v772 = vrcp.pop %v758
        %v773 = vmul.f32 1.0, %v772
        %v774 = vrcp.pop %v759
        %v775 = vmul.f32 1.0, %v774
        %v776 = vmul.f32 %v720, %v761
        %v777 = vmul.f32 %v721, %v763
        %v778 = vmul.f32 %v722, %v765
        %v779 = vmul.f32 %v723, %v767
        %v780 = vmul.f32 %v724, %v769
        %v781 = vmul.f32 %v725, %v771
        %v782 = vmul.f32 %v726, %v773
        %v783 = vmul.f32 %v727, %v775
        %s784 = scalar_lea.vmem %s216, 64 [#allocation5]
        %785 = vst [vmem:[%s784] sm:$0xff] %v776
        %786 = vst [vmem:[%s784 + $0x8] sm:$0xff] %v777
        %787 = vst [vmem:[%s784 + $0x10] sm:$0xff] %v778
        %788 = vst [vmem:[%s784 + $0x18] sm:$0xff] %v779
        %789 = vst [vmem:[%s784 + $0x20] sm:$0xff] %v780
        %790 = vst [vmem:[%s784 + $0x28] sm:$0xff] %v781
        %791 = vst [vmem:[%s784 + $0x30] sm:$0xff] %v782
        %792 = vst [vmem:[%s784 + $0x38] sm:$0xff] %v783
        %s793 = scalar_lea.vmem %s192, 96 [#allocation2]
        %v794 = vld [vmem:[%s793] sm:$0xff]
        %v795 = vld [vmem:[%s793 + $0x8] sm:$0xff]
        %v796 = vld [vmem:[%s793 + $0x10] sm:$0xff]
        %v797 = vld [vmem:[%s793 + $0x18] sm:$0xff]
        %v798 = vld [vmem:[%s793 + $0x20] sm:$0xff]
        %v799 = vld [vmem:[%s793 + $0x28] sm:$0xff]
        %v806 = vunpack.c.l.b16 %v794
        %v807 = vunpack.c.h.b16 %v794
        %v808 = vunpack.c.l.b16 %v795
        %v809 = vunpack.c.h.b16 %v795
        %v810 = vunpack.c.l.b16 %v796
        %v811 = vunpack.c.h.b16 %v796
        %v812 = vunpack.c.l.b16 %v797
        %v813 = vunpack.c.h.b16 %v797
        %v814 = vunpack.c.l.b16 %v798
        %v815 = vunpack.c.h.b16 %v798
        %v816 = vunpack.c.l.b16 %v799
        %v817 = vunpack.c.h.b16 %v799
        %v818 = vpack.c.b16 %v808, %v806
        %v819 = vpack.c.b16 %v809, %v807
        %v820 = vpack.c.b16 %v812, %v810
        %v821 = vpack.c.b16 %v813, %v811
        %v822 = vpack.c.b16 %v816, %v814
        %v823 = vpack.c.b16 %v817, %v815
        %830 = vmatprep.subr.bf16.mxu0 0
        %831 = vmatpush1.bf16.msra.mxu0 0
        %832 = vmatprep.subr.bf16.mxu0 0
        %833 = vmatpush1.bf16.msra.mxu0 0
        %834 = vmatprep.subr.bf16.mxu0 0
        %835 = vmatpush1.bf16.msra.mxu0 0
        %836 = vmatprep.subr.bf16.mxu0 0
        %837 = vmatpush1.bf16.msra.mxu0 0
        %838 = vmatprep.subr.bf16.mxu0 0
        %839 = vmatpush1.bf16.msra.mxu0 0
        %840 = vmatprep.subr.bf16.mxu0 %v823
        %841 = vmatpush1.bf16.msra.mxu0 %v822
        %842 = vmatprep.subr.bf16.mxu0 %v821
        %843 = vmatpush1.bf16.msra.mxu0 %v820
        %844 = vmatprep.subr.bf16.mxu0 %v819
        %845 = vmatpush1.bf16.msra.mxu0 %v818
        %846 = vmatprep.subr.bf16.mxu0 0
        %847 = vmatpush2.bf16.msra.mxu0 0
        %848 = vmatprep.subr.bf16.mxu0 0
        %849 = vmatpush2.bf16.msra.mxu0 0
        %850 = vmatprep.subr.bf16.mxu0 0
        %851 = vmatpush2.bf16.msra.mxu0 0
        %852 = vmatprep.subr.bf16.mxu0 0
        %853 = vmatpush2.bf16.msra.mxu0 0
        %854 = vmatprep.subr.bf16.mxu0 0
        %855 = vmatpush2.bf16.msra.mxu0 0
        %856 = vmatprep.subr.bf16.mxu0 0
        %857 = vmatpush2.bf16.msra.mxu0 0
        %858 = vmatprep.subr.bf16.mxu0 0
        %859 = vmatpush2.bf16.msra.mxu0 0
        %860 = vmatprep.subr.bf16.mxu0 0
        %861 = vmatpush2.bf16.msra.mxu0 0
        %862 = vmatprep.mubr.bf16.mxu0 0
        %863 = vmatmul.mubr.bf16.gmra.mxu0 %v280
        %v864 = vpop.f32.mrf.mxu0
        %v865 = vadd.f32 0.0, %v864
        %v866 = vpop.f32.mrf.mxu0
        %v867 = vadd.f32 0.0, %v866
        %v868 = vpop.f32.mrf.mxu0
        %v869 = vadd.f32 0.0, %v868
        %v870 = vpop.f32.mrf.mxu0
        %v871 = vadd.f32 0.0, %v870
        %872 = vmatprep.mubr.bf16.mxu0 0
        %873 = vmatmul.mubr.bf16.gmra.mxu0 %v283
        %v874 = vpop.f32.mrf.mxu0
        %v875 = vadd.f32 0.0, %v874
        %v876 = vpop.f32.mrf.mxu0
        %v877 = vadd.f32 0.0, %v876
        %v878 = vpop.f32.mrf.mxu0
        %v879 = vadd.f32 0.0, %v878
        %v880 = vpop.f32.mrf.mxu0
        %v881 = vadd.f32 0.0, %v880
        %882 = vdwg.mxu0
        %v883 = vadd.f32 %v865, %v867
        %v884 = vadd.f32 %v883, %v869
        %v885 = vadd.f32 %v884, %v871
        %v886 = vadd.f32 %v885, %v875
        %v887 = vadd.f32 %v886, %v877
        %v888 = vadd.f32 %v887, %v879
        %v889 = vadd.f32 %v888, %v881
        %890 = vadd.xlane.f32.xlu0 %v889
        %v891 = vpop.xlane.xlu0 %890
        %v892 = vrot.slane %v891, 4
        %v893 = vadd.f32 %v891, %v892
        %v894 = vrot.slane %v893, 2
        %v895 = vadd.f32 %v893, %v894
        %v896 = vrot.slane %v895, 1
        %v897 = vadd.f32 %v895, %v896
        %s898 = vtos %v897
        %v899 = vmul.f32 %v865, %v865
        %v900 = vmul.f32 %v867, %v867
        %v901 = vmul.f32 %v869, %v869
        %v902 = vmul.f32 %v871, %v871
        %v903 = vmul.f32 %v875, %v875
        %v904 = vmul.f32 %v877, %v877
        %v905 = vmul.f32 %v879, %v879
        %v906 = vmul.f32 %v881, %v881
        %v907 = vadd.f32 %v899, %v900
        %v908 = vadd.f32 %v907, %v901
        %v909 = vadd.f32 %v908, %v902
        %v910 = vadd.f32 %v909, %v903
        %v911 = vadd.f32 %v910, %v904
        %v912 = vadd.f32 %v911, %v905
        %v913 = vadd.f32 %v912, %v906
        %914 = vadd.xlane.f32.xlu0 %v913
        %v915 = vpop.xlane.xlu0 %914
        %v916 = vrot.slane %v915, 4
        %v917 = vadd.f32 %v915, %v916
        %v918 = vrot.slane %v917, 2
        %v919 = vadd.f32 %v917, %v918
        %v920 = vrot.slane %v919, 1
        %v921 = vadd.f32 %v919, %v920
        %s922 = vtos %v921
        %s923 = smul.f32 %s898, 0.00012207031
        %s924 = smul.f32 %s922, 0.00012207031
        %s925 = smul.f32 %s923, %s923
        %s926 = ssub.f32 %s924, %s925
        %s927 = sadd.f32 %s926, 1e-05
        %v928 = vstv %s927
        %v929 = vrsqrt.pop %v928
        %s930 = vtos %v929
        %v931 = vstv %s930
        %v932 = vmul.f32 %v224, %v931
        %v933 = vmul.f32 %v225, %v931
        %v934 = vmul.f32 %v226, %v931
        %v935 = vmul.f32 %v227, %v931
        %v936 = vstv %s923
        %v937 = vmul.f32 %v936, %v932
        %v938 = vmul.f32 %v936, %v933
        %v939 = vmul.f32 %v936, %v934
        %v940 = vmul.f32 %v936, %v935
        %v941 = vsub.f32 %v228, %v937
        %v942 = vsub.f32 %v229, %v938
        %v943 = vsub.f32 %v230, %v939
        %v944 = vsub.f32 %v231, %v940
        %946 = vset.pattern.permute.xlu0 0
        %947 = vperm.xlu0 %946, %v932
        %v948 = vpop.permute.xlu0 %947
        %951 = vset.pattern.permute.xlu0 0
        %952 = vperm.xlu0 %951, %v933
        %v953 = vpop.permute.xlu0 %952
        %956 = vset.pattern.permute.xlu0 0
        %957 = vperm.xlu0 %956, %v934
        %v958 = vpop.permute.xlu0 %957
        %961 = vset.pattern.permute.xlu0 0
        %962 = vperm.xlu0 %961, %v935
        %v963 = vpop.permute.xlu0 %962
        %v965 = vmul.f32 %v865, %v948
        %v966 = vmul.f32 %v867, %v948
        %v967 = vmul.f32 %v869, %v953
        %v968 = vmul.f32 %v871, %v953
        %v969 = vmul.f32 %v875, %v958
        %v970 = vmul.f32 %v877, %v958
        %v971 = vmul.f32 %v879, %v963
        %v972 = vmul.f32 %v881, %v963
        %974 = vset.pattern.permute.xlu0 0
        %975 = vperm.xlu0 %974, %v941
        %v976 = vpop.permute.xlu0 %975
        %979 = vset.pattern.permute.xlu0 0
        %980 = vperm.xlu0 %979, %v942
        %v981 = vpop.permute.xlu0 %980
        %984 = vset.pattern.permute.xlu0 0
        %985 = vperm.xlu0 %984, %v943
        %v986 = vpop.permute.xlu0 %985
        %989 = vset.pattern.permute.xlu0 0
        %990 = vperm.xlu0 %989, %v944
        %v991 = vpop.permute.xlu0 %990
        %v993 = vadd.f32 %v965, %v976
        %v994 = vadd.f32 %v966, %v976
        %v995 = vadd.f32 %v967, %v981
        %v996 = vadd.f32 %v968, %v981
        %v997 = vadd.f32 %v969, %v986
        %v998 = vadd.f32 %v970, %v986
        %v999 = vadd.f32 %v971, %v991
        %v1000 = vadd.f32 %v972, %v991
        %v1001 = vxor.u32 %v993, 2147483648
        %v1002 = vxor.u32 %v994, 2147483648
        %v1003 = vxor.u32 %v995, 2147483648
        %v1004 = vxor.u32 %v996, 2147483648
        %v1005 = vxor.u32 %v997, 2147483648
        %v1006 = vxor.u32 %v998, 2147483648
        %v1007 = vxor.u32 %v999, 2147483648
        %v1008 = vxor.u32 %v1000, 2147483648
        %v1009 = vmul.f32 %v1001, 1.442695
        %v1010 = vpow.pop %v1009
        %v1011 = vmul.f32 %v1002, 1.442695
        %v1012 = vpow.pop %v1011
        %v1013 = vmul.f32 %v1003, 1.442695
        %v1014 = vpow.pop %v1013
        %v1015 = vmul.f32 %v1004, 1.442695
        %v1016 = vpow.pop %v1015
        %v1017 = vmul.f32 %v1005, 1.442695
        %v1018 = vpow.pop %v1017
        %v1019 = vmul.f32 %v1006, 1.442695
        %v1020 = vpow.pop %v1019
        %v1021 = vmul.f32 %v1007, 1.442695
        %v1022 = vpow.pop %v1021
        %v1023 = vmul.f32 %v1008, 1.442695
        %v1024 = vpow.pop %v1023
        %v1025 = vadd.f32 %v1010, 1.0
        %v1026 = vadd.f32 %v1012, 1.0
        %v1027 = vadd.f32 %v1014, 1.0
        %v1028 = vadd.f32 %v1016, 1.0
        %v1029 = vadd.f32 %v1018, 1.0
        %v1030 = vadd.f32 %v1020, 1.0
        %v1031 = vadd.f32 %v1022, 1.0
        %v1032 = vadd.f32 %v1024, 1.0
        %v1033 = vrcp.pop %v1025
        %v1034 = vmul.f32 1.0, %v1033
        %v1035 = vrcp.pop %v1026
        %v1036 = vmul.f32 1.0, %v1035
        %v1037 = vrcp.pop %v1027
        %v1038 = vmul.f32 1.0, %v1037
        %v1039 = vrcp.pop %v1028
        %v1040 = vmul.f32 1.0, %v1039
        %v1041 = vrcp.pop %v1029
        %v1042 = vmul.f32 1.0, %v1041
        %v1043 = vrcp.pop %v1030
        %v1044 = vmul.f32 1.0, %v1043
        %v1045 = vrcp.pop %v1031
        %v1046 = vmul.f32 1.0, %v1045
        %v1047 = vrcp.pop %v1032
        %v1048 = vmul.f32 1.0, %v1047
        %v1049 = vmul.f32 %v993, %v1034
        %v1050 = vmul.f32 %v994, %v1036
        %v1051 = vmul.f32 %v995, %v1038
        %v1052 = vmul.f32 %v996, %v1040
        %v1053 = vmul.f32 %v997, %v1042
        %v1054 = vmul.f32 %v998, %v1044
        %v1055 = vmul.f32 %v999, %v1046
        %v1056 = vmul.f32 %v1000, %v1048
        %s1057 = scalar_lea.vmem %s216, 128 [#allocation5]
        %1058 = vst [vmem:[%s1057] sm:$0xff] %v1049
        %1059 = vst [vmem:[%s1057 + $0x8] sm:$0xff] %v1050
        %1060 = vst [vmem:[%s1057 + $0x10] sm:$0xff] %v1051
        %1061 = vst [vmem:[%s1057 + $0x18] sm:$0xff] %v1052
        %1062 = vst [vmem:[%s1057 + $0x20] sm:$0xff] %v1053
        %1063 = vst [vmem:[%s1057 + $0x28] sm:$0xff] %v1054
        %1064 = vst [vmem:[%s1057 + $0x30] sm:$0xff] %v1055
        %1065 = vst [vmem:[%s1057 + $0x38] sm:$0xff] %v1056
        %s1066 = scalar_lea.vmem %s192, 144 [#allocation2]
        %v1067 = vld [vmem:[%s1066] sm:$0xff]
        %v1068 = vld [vmem:[%s1066 + $0x8] sm:$0xff]
        %v1069 = vld [vmem:[%s1066 + $0x10] sm:$0xff]
        %v1070 = vld [vmem:[%s1066 + $0x18] sm:$0xff]
        %v1071 = vld [vmem:[%s1066 + $0x20] sm:$0xff]
        %v1072 = vld [vmem:[%s1066 + $0x28] sm:$0xff]
        %v1079 = vunpack.c.l.b16 %v1067
        %v1080 = vunpack.c.h.b16 %v1067
        %v1081 = vunpack.c.l.b16 %v1068
        %v1082 = vunpack.c.h.b16 %v1068
        %v1083 = vunpack.c.l.b16 %v1069
        %v1084 = vunpack.c.h.b16 %v1069
        %v1085 = vunpack.c.l.b16 %v1070
        %v1086 = vunpack.c.h.b16 %v1070
        %v1087 = vunpack.c.l.b16 %v1071
        %v1088 = vunpack.c.h.b16 %v1071
        %v1089 = vunpack.c.l.b16 %v1072
        %v1090 = vunpack.c.h.b16 %v1072
        %v1091 = vpack.c.b16 %v1081, %v1079
        %v1092 = vpack.c.b16 %v1082, %v1080
        %v1093 = vpack.c.b16 %v1085, %v1083
        %v1094 = vpack.c.b16 %v1086, %v1084
        %v1095 = vpack.c.b16 %v1089, %v1087
        %v1096 = vpack.c.b16 %v1090, %v1088
        %1103 = vmatprep.subr.bf16.mxu0 0
        %1104 = vmatpush1.bf16.msra.mxu0 0
        %1105 = vmatprep.subr.bf16.mxu0 0
        %1106 = vmatpush1.bf16.msra.mxu0 0
        %1107 = vmatprep.subr.bf16.mxu0 0
        %1108 = vmatpush1.bf16.msra.mxu0 0
        %1109 = vmatprep.subr.bf16.mxu0 0
        %1110 = vmatpush1.bf16.msra.mxu0 0
        %1111 = vmatprep.subr.bf16.mxu0 0
        %1112 = vmatpush1.bf16.msra.mxu0 0
        %1113 = vmatprep.subr.bf16.mxu0 %v1096
        %1114 = vmatpush1.bf16.msra.mxu0 %v1095
        %1115 = vmatprep.subr.bf16.mxu0 %v1094
        %1116 = vmatpush1.bf16.msra.mxu0 %v1093
        %1117 = vmatprep.subr.bf16.mxu0 %v1092
        %1118 = vmatpush1.bf16.msra.mxu0 %v1091
        %1119 = vmatprep.subr.bf16.mxu0 0
        %1120 = vmatpush2.bf16.msra.mxu0 0
        %1121 = vmatprep.subr.bf16.mxu0 0
        %1122 = vmatpush2.bf16.msra.mxu0 0
        %1123 = vmatprep.subr.bf16.mxu0 0
        %1124 = vmatpush2.bf16.msra.mxu0 0
        %1125 = vmatprep.subr.bf16.mxu0 0
        %1126 = vmatpush2.bf16.msra.mxu0 0
        %1127 = vmatprep.subr.bf16.mxu0 0
        %1128 = vmatpush2.bf16.msra.mxu0 0
        %1129 = vmatprep.subr.bf16.mxu0 0
        %1130 = vmatpush2.bf16.msra.mxu0 0
        %1131 = vmatprep.subr.bf16.mxu0 0
        %1132 = vmatpush2.bf16.msra.mxu0 0
        %1133 = vmatprep.subr.bf16.mxu0 0
        %1134 = vmatpush2.bf16.msra.mxu0 0
        %1135 = vmatprep.mubr.bf16.mxu0 0
        %1136 = vmatmul.mubr.bf16.gmra.mxu0 %v280
        %v1137 = vpop.f32.mrf.mxu0
        %v1138 = vadd.f32 0.0, %v1137
        %v1139 = vpop.f32.mrf.mxu0
        %v1140 = vadd.f32 0.0, %v1139
        %v1141 = vpop.f32.mrf.mxu0
        %v1142 = vadd.f32 0.0, %v1141
        %v1143 = vpop.f32.mrf.mxu0
        %v1144 = vadd.f32 0.0, %v1143
        %1145 = vmatprep.mubr.bf16.mxu0 0
        %1146 = vmatmul.mubr.bf16.gmra.mxu0 %v283
        %v1147 = vpop.f32.mrf.mxu0
        %v1148 = vadd.f32 0.0, %v1147
        %v1149 = vpop.f32.mrf.mxu0
        %v1150 = vadd.f32 0.0, %v1149
        %v1151 = vpop.f32.mrf.mxu0
        %v1152 = vadd.f32 0.0, %v1151
        %v1153 = vpop.f32.mrf.mxu0
        %v1154 = vadd.f32 0.0, %v1153
        %1155 = vdwg.mxu0
        %v1156 = vadd.f32 %v1138, %v1140
        %v1157 = vadd.f32 %v1156, %v1142
        %v1158 = vadd.f32 %v1157, %v1144
        %v1159 = vadd.f32 %v1158, %v1148
        %v1160 = vadd.f32 %v1159, %v1150
        %v1161 = vadd.f32 %v1160, %v1152
        %v1162 = vadd.f32 %v1161, %v1154
        %1163 = vadd.xlane.f32.xlu0 %v1162
        %v1164 = vpop.xlane.xlu0 %1163
        %v1165 = vrot.slane %v1164, 4
        %v1166 = vadd.f32 %v1164, %v1165
        %v1167 = vrot.slane %v1166, 2
        %v1168 = vadd.f32 %v1166, %v1167
        %v1169 = vrot.slane %v1168, 1
        %v1170 = vadd.f32 %v1168, %v1169
        %s1171 = vtos %v1170
        %v1172 = vmul.f32 %v1138, %v1138
        %v1173 = vmul.f32 %v1140, %v1140
        %v1174 = vmul.f32 %v1142, %v1142
        %v1175 = vmul.f32 %v1144, %v1144
        %v1176 = vmul.f32 %v1148, %v1148
        %v1177 = vmul.f32 %v1150, %v1150
        %v1178 = vmul.f32 %v1152, %v1152
        %v1179 = vmul.f32 %v1154, %v1154
        %v1180 = vadd.f32 %v1172, %v1173
        %v1181 = vadd.f32 %v1180, %v1174
        %v1182 = vadd.f32 %v1181, %v1175
        %v1183 = vadd.f32 %v1182, %v1176
        %v1184 = vadd.f32 %v1183, %v1177
        %v1185 = vadd.f32 %v1184, %v1178
        %v1186 = vadd.f32 %v1185, %v1179
        %1187 = vadd.xlane.f32.xlu0 %v1186
        %v1188 = vpop.xlane.xlu0 %1187
        %v1189 = vrot.slane %v1188, 4
        %v1190 = vadd.f32 %v1188, %v1189
        %v1191 = vrot.slane %v1190, 2
        %v1192 = vadd.f32 %v1190, %v1191
        %v1193 = vrot.slane %v1192, 1
        %v1194 = vadd.f32 %v1192, %v1193
        %s1195 = vtos %v1194
        %s1196 = smul.f32 %s1171, 0.00012207031
        %s1197 = smul.f32 %s1195, 0.00012207031
        %s1198 = smul.f32 %s1196, %s1196
        %s1199 = ssub.f32 %s1197, %s1198
        %s1200 = sadd.f32 %s1199, 1e-05
        %v1201 = vstv %s1200
        %v1202 = vrsqrt.pop %v1201
        %s1203 = vtos %v1202
        %v1204 = vstv %s1203
        %v1205 = vmul.f32 %v224, %v1204
        %v1206 = vmul.f32 %v225, %v1204
        %v1207 = vmul.f32 %v226, %v1204
        %v1208 = vmul.f32 %v227, %v1204
        %v1209 = vstv %s1196
        %v1210 = vmul.f32 %v1209, %v1205
        %v1211 = vmul.f32 %v1209, %v1206
        %v1212 = vmul.f32 %v1209, %v1207
        %v1213 = vmul.f32 %v1209, %v1208
        %v1214 = vsub.f32 %v228, %v1210
        %v1215 = vsub.f32 %v229, %v1211
        %v1216 = vsub.f32 %v230, %v1212
        %v1217 = vsub.f32 %v231, %v1213
        %1219 = vset.pattern.permute.xlu0 0
        %1220 = vperm.xlu0 %1219, %v1205
        %v1221 = vpop.permute.xlu0 %1220
        %1224 = vset.pattern.permute.xlu0 0
        %1225 = vperm.xlu0 %1224, %v1206
        %v1226 = vpop.permute.xlu0 %1225
        %1229 = vset.pattern.permute.xlu0 0
        %1230 = vperm.xlu0 %1229, %v1207
        %v1231 = vpop.permute.xlu0 %1230
        %1234 = vset.pattern.permute.xlu0 0
        %1235 = vperm.xlu0 %1234, %v1208
        %v1236 = vpop.permute.xlu0 %1235
        %v1238 = vmul.f32 %v1138, %v1221
        %v1239 = vmul.f32 %v1140, %v1221
        %v1240 = vmul.f32 %v1142, %v1226
        %v1241 = vmul.f32 %v1144, %v1226
        %v1242 = vmul.f32 %v1148, %v1231
        %v1243 = vmul.f32 %v1150, %v1231
        %v1244 = vmul.f32 %v1152, %v1236
        %v1245 = vmul.f32 %v1154, %v1236
        %1247 = vset.pattern.permute.xlu0 0
        %1248 = vperm.xlu0 %1247, %v1214
        %v1249 = vpop.permute.xlu0 %1248
        %1252 = vset.pattern.permute.xlu0 0
        %1253 = vperm.xlu0 %1252, %v1215
        %v1254 = vpop.permute.xlu0 %1253
        %1257 = vset.pattern.permute.xlu0 0
        %1258 = vperm.xlu0 %1257, %v1216
        %v1259 = vpop.permute.xlu0 %1258
        %1262 = vset.pattern.permute.xlu0 0
        %1263 = vperm.xlu0 %1262, %v1217
        %v1264 = vpop.permute.xlu0 %1263
        %v1266 = vadd.f32 %v1238, %v1249
        %v1267 = vadd.f32 %v1239, %v1249
        %v1268 = vadd.f32 %v1240, %v1254
        %v1269 = vadd.f32 %v1241, %v1254
        %v1270 = vadd.f32 %v1242, %v1259
        %v1271 = vadd.f32 %v1243, %v1259
        %v1272 = vadd.f32 %v1244, %v1264
        %v1273 = vadd.f32 %v1245, %v1264
        %v1274 = vxor.u32 %v1266, 2147483648
        %v1275 = vxor.u32 %v1267, 2147483648
        %v1276 = vxor.u32 %v1268, 2147483648
        %v1277 = vxor.u32 %v1269, 2147483648
        %v1278 = vxor.u32 %v1270, 2147483648
        %v1279 = vxor.u32 %v1271, 2147483648
        %v1280 = vxor.u32 %v1272, 2147483648
        %v1281 = vxor.u32 %v1273, 2147483648
        %v1282 = vmul.f32 %v1274, 1.442695
        %v1283 = vpow.pop %v1282
        %v1284 = vmul.f32 %v1275, 1.442695
        %v1285 = vpow.pop %v1284
        %v1286 = vmul.f32 %v1276, 1.442695
        %v1287 = vpow.pop %v1286
        %v1288 = vmul.f32 %v1277, 1.442695
        %v1289 = vpow.pop %v1288
        %v1290 = vmul.f32 %v1278, 1.442695
        %v1291 = vpow.pop %v1290
        %v1292 = vmul.f32 %v1279, 1.442695
        %v1293 = vpow.pop %v1292
        %v1294 = vmul.f32 %v1280, 1.442695
        %v1295 = vpow.pop %v1294
        %v1296 = vmul.f32 %v1281, 1.442695
        %v1297 = vpow.pop %v1296
        %v1298 = vadd.f32 %v1283, 1.0
        %v1299 = vadd.f32 %v1285, 1.0
        %v1300 = vadd.f32 %v1287, 1.0
        %v1301 = vadd.f32 %v1289, 1.0
        %v1302 = vadd.f32 %v1291, 1.0
        %v1303 = vadd.f32 %v1293, 1.0
        %v1304 = vadd.f32 %v1295, 1.0
        %v1305 = vadd.f32 %v1297, 1.0
        %v1306 = vrcp.pop %v1298
        %v1307 = vmul.f32 1.0, %v1306
        %v1308 = vrcp.pop %v1299
        %v1309 = vmul.f32 1.0, %v1308
        %v1310 = vrcp.pop %v1300
        %v1311 = vmul.f32 1.0, %v1310
        %v1312 = vrcp.pop %v1301
        %v1313 = vmul.f32 1.0, %v1312
        %v1314 = vrcp.pop %v1302
        %v1315 = vmul.f32 1.0, %v1314
        %v1316 = vrcp.pop %v1303
        %v1317 = vmul.f32 1.0, %v1316
        %v1318 = vrcp.pop %v1304
        %v1319 = vmul.f32 1.0, %v1318
        %v1320 = vrcp.pop %v1305
        %v1321 = vmul.f32 1.0, %v1320
        %v1322 = vmul.f32 %v1266, %v1307
        %v1323 = vmul.f32 %v1267, %v1309
        %v1324 = vmul.f32 %v1268, %v1311
        %v1325 = vmul.f32 %v1269, %v1313
        %v1326 = vmul.f32 %v1270, %v1315
        %v1327 = vmul.f32 %v1271, %v1317
        %v1328 = vmul.f32 %v1272, %v1319
        %v1329 = vmul.f32 %v1273, %v1321
        %s1330 = scalar_lea.vmem %s216, 192 [#allocation5]
        %1331 = vst [vmem:[%s1330] sm:$0xff] %v1322
        %1332 = vst [vmem:[%s1330 + $0x8] sm:$0xff] %v1323
        %1333 = vst [vmem:[%s1330 + $0x10] sm:$0xff] %v1324
        %1334 = vst [vmem:[%s1330 + $0x18] sm:$0xff] %v1325
        %1335 = vst [vmem:[%s1330 + $0x20] sm:$0xff] %v1326
        %1336 = vst [vmem:[%s1330 + $0x28] sm:$0xff] %v1327
        %1337 = vst [vmem:[%s1330 + $0x30] sm:$0xff] %v1328
        %1338 = vst [vmem:[%s1330 + $0x38] sm:$0xff] %v1329
        %s1339 = sand.u32 %s118, 1
        %s1340 = scalar_lea.sflag [#allocation4], %s1339
        %s1341 = sand.u32 %s118, 1
        %s1342 = smul.addr %s1341, 256
        %s1343 = scalar_lea.vmem [#allocation5], %s1342
        // Predicated region
        $region41: #{tpu_custom_call.1} parent=35 // pred_check
          %p1344 = pneg %p128
        $region42: #{tpu_custom_call.1} parent=35 // pred_check_branch
          %1346 = sbr.rel (%p1344) target = $region44
        $region43: #{tpu_custom_call.1} parent=35 // pred_region
          %s1347 = smul.u32 4, %s21
          %s1349 = ssub.s32 4096, 4096
          %1350 = vsyncadd %s1340, %s1349
          %s1351 = smul.addr %s1347, 8
          %s1352 = smul.addr %s1351, 128
          %s1353 = scalar_lea.hbm %s4, %s1352
          %s1354 = sshll.u32 %s1343, 4
          %s1355 = int_to_ptr.vmem [resolvable:$true] %s1354
          %1360 = dma.vmem_to_hbm [thread:$0]  %s1355, 4096, %s1353, %s1340, 256, 256, 16
        $region44: #{tpu_custom_call.1} parent=35 // pred_fallthru
          _
      $region36: #{tpu_custom_call.1} parent=5 // pred_fallthru
        _
      %p1361 = scmp.le.s32.totalorder 2, %s16
      // Predicated region
      $region45: #{tpu_custom_call.1} parent=5 // pred_check
        %p1362 = pneg %p1361
      $region46: #{tpu_custom_call.1} parent=5 // pred_check_branch
        %1364 = sbr.rel (%p1362) target = $region48
      $region47: #{tpu_custom_call.1} parent=5 // pred_region
        %s1365 = ssub.s32 %s16, 2
        // Predicated region
        $region49: #{tpu_custom_call.1} parent=47 // pred_check
          %p1366 = pneg %p134
        $region50: #{tpu_custom_call.1} parent=47 // pred_check_branch
          %1368 = sbr.rel (%p1366) target = $region52
        $region51: #{tpu_custom_call.1} parent=47 // pred_region
          %s1369 = sand.u32 %s119, 1
          %s1370 = scalar_lea.sflag [#allocation4], %s1369
          %s1371 = sand.u32 %s119, 1
          %s1372 = smul.addr %s1371, 256
          %s1373 = scalar_lea.vmem [#allocation5], %s1372
          %1374 = dma.done %s1370, 4096
        $region52: #{tpu_custom_call.1} parent=47 // pred_fallthru
          _
      $region48: #{tpu_custom_call.1} parent=5 // pred_fallthru
        _
    $region6: #{tpu_custom_call.1} parent=1 // loop_footer
      %s20 = sadd.s32 1, %s16
    $region7: #{tpu_custom_call.1} parent=1 // loop_footer_branch
      %15 = sbr.rel target = $region3
    $region8: #{tpu_custom_call.1} parent=1 // loop_exit
      _
    %1375 = vsyncpa [#allocation3], 1
    %s1376 = scalar_lea.sflag [#allocation3], 1
    %1377 = vsyncpa %s1376, 1
    %1378 = vsyncpa [#allocation4], 1
    %s1379 = scalar_lea.sflag [#allocation4], 1
    %1380 = vsyncpa %s1379, 1

</llo_original>
